<compile_context>
chip_gen: v7x
topology: tpu7x:2x2x1
jax: 0.10.0
libtpu: 0.0.40
codegen_flags: <defaults>
</compile_context>

<pallas_src>
import math
import functools

import jax
import jax.numpy as jnp
from jax import lax
from jax.experimental import pallas as pl
from jax.experimental.pallas import tpu as pltpu


# -----------------------------------------------------------------------------
# Pallas kernel: one fused multi-head GAT layer over the full (small) graph.
# -----------------------------------------------------------------------------
def _gat_layer_kernel(num_heads, out_dim,
                      h_ref, w_ref, b_ref, asrc_ref, adst_ref, adj_ref,
                      ab_ref, out_ref):
    # z = h @ W_all + b_all                                    (N, H*D)
    z = jnp.dot(h_ref[...], w_ref[...],
                preferred_element_type=jnp.float32) + b_ref[...]

    # Source attention partials, lane-dense along the node axis:
    #   s_lane[h, u] = z_u[head h] . a_src_h                   (H, N)
    # (contracts z's feature axis directly -> no (N,1)->(1,N) relayout later)
    s_lane = lax.dot_general(asrc_ref[...], z,
                             dimension_numbers=(((1,), (1,)), ((), ())),
                             preferred_element_type=jnp.float32)

    # Destination attention partials, naturally column-oriented:
    #   d_all[v, h] = z_v[head h] . a_dst_h                    (N, H)
    d_all = jnp.dot(z, adst_ref[...], preferred_element_type=jnp.float32)

    adj = adj_ref[...]                                         # (N_dst, N_src)
    neg_inf = jnp.float32(-1e30)

    for hh in range(num_heads):                                # small H, unrolled
        # e[v, u] = leaky_relu(s[u] + d[v] + bias_h) for edge u -> v
        e = s_lane[hh:hh + 1, :] + d_all[:, hh:hh + 1] + ab_ref[hh]
        e = jnp.where(e >= 0.0, e, 0.01 * e)      # F.leaky_relu default slope
        e = jnp.where(adj > 0.0, e, neg_inf)      # mask non-edges

        # Masked softmax over incoming edges (src axis) per destination node.
        m = jnp.max(e, axis=1, keepdims=True)                  # (N, 1)
        p = jnp.exp(e - m) * adj                               # zero non-edges
        denom = jnp.sum(p, axis=1, keepdims=True)              # (N, 1)
        denom = jnp.maximum(denom, jnp.float32(1e-30))         # isolated nodes
        alpha = p * pl.reciprocal(denom, approx=True)          # EUP reciprocal

        # h_out[v, head h] = sum_u alpha[v, u] * z_u[head h]
        lo = hh * out_dim
        out_ref[:, lo:lo + out_dim] = jnp.dot(
            alpha, z[:, lo:lo + out_dim], preferred_element_type=jnp.float32)


def gat_layer_forward(h, adj, head_params, merge):
    """Runs one multi-head GAT layer (all heads fused) with a single Pallas call."""
    num_heads = len(head_params)
    out_dim, in_dim = head_params[0]["W"].shape
    n = h.shape[0]
    hd = num_heads * out_dim

    # Stack per-head parameters into layer-wide operands.
    w_all = jnp.concatenate([p["W"].T for p in head_params], axis=1)      # (in, H*D)
    b_all = jnp.concatenate([p["b"] for p in head_params]).reshape(1, hd)  # (1, H*D)

    # Block layout so one matmul covers every head:
    #   asrc[h, h*D:(h+1)*D] = a_src_h ; adst[h*D:(h+1)*D, h] = a_dst_h
    asrc = jnp.zeros((num_heads, hd), jnp.float32)
    adst = jnp.zeros((hd, num_heads), jnp.float32)
    for hh, p in enumerate(head_params):
        asrc = asrc.at[hh, hh * out_dim:(hh + 1) * out_dim].set(p["att_W"][0, :out_dim])
        adst = adst.at[hh * out_dim:(hh + 1) * out_dim, hh].set(p["att_W"][0, out_dim:])
    ab = jnp.concatenate([p["att_b"] for p in head_params]).astype(jnp.float32)  # (H,)

    vmem = pl.BlockSpec(memory_space=pltpu.MemorySpace.VMEM)
    smem = pl.BlockSpec(memory_space=pltpu.MemorySpace.SMEM)

    flops = (2 * n * in_dim * hd            # linear projection
             + 4 * n * hd * num_heads       # attention partials
             + 8 * num_heads * n * n        # scores + masked softmax (elementwise)
             + 2 * num_heads * n * n * out_dim)  # weighted aggregation
    bytes_accessed = 4 * (h.size + w_all.size + b_all.size + asrc.size
                          + adst.size + adj.size + ab.size + n * hd)

    out = pl.pallas_call(
        functools.partial(_gat_layer_kernel, num_heads, out_dim),
        out_shape=jax.ShapeDtypeStruct((n, hd), jnp.float32),
        in_specs=[vmem, vmem, vmem, vmem, vmem, vmem, smem],
        out_specs=vmem,
        cost_estimate=pl.CostEstimate(flops=flops,
                                      transcendentals=num_heads * n * (n + 1),
                                      bytes_accessed=bytes_accessed),
    )(h, w_all, b_all, asrc, adst, adj, ab)

    if merge == "cat":
        return out                                        # already [head0|head1|...]
    return out.reshape(n, num_heads, out_dim).mean(axis=1)


# -----------------------------------------------------------------------------
# Full GAT (inter-layer ELU and merge are cheap glue in plain JAX).
# -----------------------------------------------------------------------------
def elu(x):
    return jnp.where(x > 0.0, x, jnp.expm1(jnp.minimum(x, 0.0)))


def gat_forward(h, adj, layers):
    for layer in layers[:-1]:
        h = gat_layer_forward(h, adj, layer["heads"], layer["merge"])
        h = elu(h)
    last = layers[-1]
    return gat_layer_forward(h, adj, last["heads"], last["merge"])


# -----------------------------------------------------------------------------
# Deterministic parameter init (xavier_normal with relu gain, like the module;
# biases keep PyTorch Linear's default uniform init).
# -----------------------------------------------------------------------------
def init_head(key, in_dim, out_dim):
    gain = math.sqrt(2.0)  # nn.init.calculate_gain('relu')
    k1, k2, k3, k4 = jax.random.split(key, 4)

    std_lin = gain * math.sqrt(2.0 / (in_dim + out_dim))
    W = std_lin * jax.random.normal(k1, (out_dim, in_dim), jnp.float32)
    bound_lin = 1.0 / math.sqrt(in_dim)
    b = jax.random.uniform(k2, (out_dim,), jnp.float32, -bound_lin, bound_lin)

    std_att = gain * math.sqrt(2.0 / (2 * out_dim + 1))
    att_W = std_att * jax.random.normal(k3, (1, 2 * out_dim), jnp.float32)
    bound_att = 1.0 / math.sqrt(2 * out_dim)
    att_b = jax.random.uniform(k4, (1,), jnp.float32, -bound_att, bound_att)

    return {"W": W, "b": b, "att_W": att_W, "att_b": att_b}


def init_gat(key, in_dim, hidden_dim, out_dim, num_heads, num_layer=2):
    layers = []
    dims = [(in_dim, hidden_dim, "cat")]
    for _ in range(1, num_layer):
        dims.append((hidden_dim * num_heads, hidden_dim, "cat"))
    dims.append((hidden_dim * num_heads, out_dim, "mean"))

    for (din, dout, merge) in dims:
        heads = []
        for _ in range(num_heads):
            key, sub = jax.random.split(key)
            heads.append(init_head(sub, din, dout))
        layers.append({"heads": heads, "merge": merge})
    return layers


# -----------------------------------------------------------------------------
# Main
# -----------------------------------------------------------------------------
if __name__ == "__main__":
    key = jax.random.PRNGKey(0)

    # Small graph: N nodes, self-loops + ring edges + a few extras (every node
    # has >= 1 incoming edge so the per-node softmax is well defined, matching
    # DGL semantics on a graph with self-loops).
    N = 8
    in_dim, hidden_dim, out_dim, num_heads, num_layer = 16, 8, 4, 2, 2

    adj = jnp.zeros((N, N), jnp.float32)
    idx = jnp.arange(N)
    adj = adj.at[idx, idx].set(1.0)                 # self loops
    adj = adj.at[idx, (idx + 1) % N].set(1.0)       # ring edge src=(i+1) -> dst=i
    adj = adj.at[(idx + 3) % N, idx].set(1.0)       # extra edges

    key, kh, kp = jax.random.split(key, 3)
    h = jax.random.normal(kh, (N, in_dim), jnp.float32)

    layers = init_gat(kp, in_dim, hidden_dim, out_dim, num_heads, num_layer)

    fwd = jax.jit(lambda hh, aa: gat_forward(hh, aa, layers))
    out = jax.block_until_ready(fwd(h, adj))

    assert out.shape == (N, out_dim), out.shape
    assert bool(jnp.all(jnp.isfinite(out)))
    print("KERNEL_OK")
</pallas_src>

<mosaic_0001>
module attributes {stable_mosaic.version = 11 : i64} {
  func.func @_gat_layer_kernel(%arg0: memref<8x16xf32, #tpu.memory_space<vmem>>, %arg1: memref<16x16xf32, #tpu.memory_space<vmem>>, %arg2: memref<1x16xf32, #tpu.memory_space<vmem>>, %arg3: memref<2x16xf32, #tpu.memory_space<vmem>>, %arg4: memref<16x2xf32, #tpu.memory_space<vmem>>, %arg5: memref<8x8xf32, #tpu.memory_space<vmem>>, %arg6: memref<2xf32, #tpu.memory_space<smem>>, %arg7: memref<8x16xf32, #tpu.memory_space<vmem>>) attributes {dimension_semantics = [], scalar_prefetch = 0 : i64, scratch_operands = 0 : i64, tpu.core_type = #tpu.core_type<tc>} {
    %c0 = arith.constant 0 : index
    %c0_0 = arith.constant 0 : index
    %0 = vector.load %arg0[%c0, %c0_0] : memref<8x16xf32, #tpu.memory_space<vmem>>, vector<8x16xf32>
    %c0_1 = arith.constant 0 : index
    %c0_2 = arith.constant 0 : index
    %1 = vector.load %arg1[%c0_1, %c0_2] : memref<16x16xf32, #tpu.memory_space<vmem>>, vector<16x16xf32>
    %cst = arith.constant dense<0.000000e+00> : vector<8x16xf32>
    %2 = tpu.matmul %0, %1, %cst {dimension_numbers = #tpu.dot_dimension_numbers<[1], [0], [0], [1], [0, 0, 1, 1], [], []>} : vector<8x16xf32>, vector<16x16xf32>, vector<8x16xf32> -> vector<8x16xf32>
    %c0_3 = arith.constant 0 : index
    %c0_4 = arith.constant 0 : index
    %3 = vector.load %arg2[%c0_3, %c0_4] : memref<1x16xf32, #tpu.memory_space<vmem>>, vector<1x16xf32>
    %4 = vector.broadcast %3 : vector<1x16xf32> to vector<8x16xf32>
    %5 = arith.addf %2, %4 : vector<8x16xf32>
    %c0_5 = arith.constant 0 : index
    %c0_6 = arith.constant 0 : index
    %6 = vector.load %arg3[%c0_5, %c0_6] : memref<2x16xf32, #tpu.memory_space<vmem>>, vector<2x16xf32>
    %cst_7 = arith.constant dense<0.000000e+00> : vector<2x8xf32>
    %7 = tpu.matmul %6, %5, %cst_7 {dimension_numbers = #tpu.dot_dimension_numbers<[1], [1], [0], [0], [0, 0, 1, 0], [], []>} : vector<2x16xf32>, vector<8x16xf32>, vector<2x8xf32> -> vector<2x8xf32>
    %c0_8 = arith.constant 0 : index
    %c0_9 = arith.constant 0 : index
    %8 = vector.load %arg4[%c0_8, %c0_9] : memref<16x2xf32, #tpu.memory_space<vmem>>, vector<16x2xf32>
    %cst_10 = arith.constant dense<0.000000e+00> : vector<8x2xf32>
    %9 = tpu.matmul %5, %8, %cst_10 {dimension_numbers = #tpu.dot_dimension_numbers<[1], [0], [0], [1], [0, 0, 1, 1], [], []>} : vector<8x16xf32>, vector<16x2xf32>, vector<8x2xf32> -> vector<8x2xf32>
    %c0_11 = arith.constant 0 : index
    %c0_12 = arith.constant 0 : index
    %10 = vector.load %arg5[%c0_11, %c0_12] : memref<8x8xf32, #tpu.memory_space<vmem>>, vector<8x8xf32>
    %11 = vector.extract_strided_slice %7 {offsets = [0, 0], sizes = [1, 8], strides = [1, 1]} : vector<2x8xf32> to vector<1x8xf32>
    %12 = vector.extract_strided_slice %9 {offsets = [0, 0], sizes = [8, 1], strides = [1, 1]} : vector<8x2xf32> to vector<8x1xf32>
    %13 = vector.broadcast %11 : vector<1x8xf32> to vector<8x8xf32>
    %14 = vector.broadcast %12 : vector<8x1xf32> to vector<8x8xf32>
    %15 = arith.addf %13, %14 : vector<8x8xf32>
    %c0_13 = arith.constant 0 : index
    %16 = memref.load %arg6[%c0_13] : memref<2xf32, #tpu.memory_space<smem>>
    %17 = vector.broadcast %16 : f32 to vector<8x8xf32>
    %18 = arith.addf %15, %17 : vector<8x8xf32>
    %cst_14 = arith.constant 0.000000e+00 : f32
    %19 = vector.broadcast %cst_14 : f32 to vector<8x8xf32>
    %20 = arith.cmpf oge, %18, %19 : vector<8x8xf32>
    %cst_15 = arith.constant 0.00999999977 : f32
    %21 = vector.broadcast %cst_15 : f32 to vector<8x8xf32>
    %22 = arith.mulf %21, %18 : vector<8x8xf32>
    %23 = arith.select %20, %18, %22 : vector<8x8xi1>, vector<8x8xf32>
    %cst_16 = arith.constant 0.000000e+00 : f32
    %24 = vector.broadcast %cst_16 : f32 to vector<8x8xf32>
    %25 = arith.cmpf ogt, %10, %24 : vector<8x8xf32>
    %cst_17 = arith.constant -1.000000e+30 : f32
    %26 = vector.broadcast %cst_17 : f32 to vector<8x8xf32>
    %27 = arith.select %25, %23, %26 : vector<8x8xi1>, vector<8x8xf32>
    %cst_18 = arith.constant dense<0xFF800000> : vector<8xf32>
    %28 = vector.multi_reduction <maximumf>, %27, %cst_18 [1] : vector<8x8xf32> to vector<8xf32>
    %29 = vector.shape_cast %28 : vector<8xf32> to vector<8x1xf32>
    %30 = vector.broadcast %29 : vector<8x1xf32> to vector<8x8xf32>
    %31 = arith.subf %27, %30 : vector<8x8xf32>
    %32 = math.exp %31 : vector<8x8xf32>
    %33 = arith.mulf %32, %10 : vector<8x8xf32>
    %cst_19 = arith.constant dense<0.000000e+00> : vector<8xf32>
    %34 = vector.multi_reduction <add>, %33, %cst_19 [1] : vector<8x8xf32> to vector<8xf32>
    %35 = vector.shape_cast %34 : vector<8xf32> to vector<8x1xf32>
    %cst_20 = arith.constant 1.000000e-30 : f32
    %36 = vector.broadcast %cst_20 : f32 to vector<8x1xf32>
    %37 = arith.maximumf %35, %36 : vector<8x1xf32>
    %38 = tpu.reciprocal %37 {approx = true} : vector<8x1xf32> -> vector<8x1xf32>
    %39 = vector.broadcast %38 : vector<8x1xf32> to vector<8x8xf32>
    %40 = arith.mulf %33, %39 : vector<8x8xf32>
    %41 = vector.extract_strided_slice %5 {offsets = [0, 0], sizes = [8, 8], strides = [1, 1]} : vector<8x16xf32> to vector<8x8xf32>
    %cst_21 = arith.constant dense<0.000000e+00> : vector<8x8xf32>
    %42 = tpu.matmul %40, %41, %cst_21 {dimension_numbers = #tpu.dot_dimension_numbers<[1], [0], [0], [1], [0, 0, 1, 1], [], []>} : vector<8x8xf32>, vector<8x8xf32>, vector<8x8xf32> -> vector<8x8xf32>
    %c0_22 = arith.constant 0 : index
    %c0_23 = arith.constant 0 : index
    %43 = vector.load %arg7[%c0_22, %c0_23] : memref<8x16xf32, #tpu.memory_space<vmem>>, vector<8x8xf32>
    tpu.vector_store %arg7[%c0_22, %c0_23], %42 {strides = array<i32>} : memref<8x16xf32, #tpu.memory_space<vmem>>, vector<8x8xf32>,
    %44 = vector.extract_strided_slice %7 {offsets = [1, 0], sizes = [1, 8], strides = [1, 1]} : vector<2x8xf32> to vector<1x8xf32>
    %45 = vector.extract_strided_slice %9 {offsets = [0, 1], sizes = [8, 1], strides = [1, 1]} : vector<8x2xf32> to vector<8x1xf32>
    %46 = vector.broadcast %44 : vector<1x8xf32> to vector<8x8xf32>
    %47 = vector.broadcast %45 : vector<8x1xf32> to vector<8x8xf32>
    %48 = arith.addf %46, %47 : vector<8x8xf32>
    %c1 = arith.constant 1 : index
    %49 = memref.load %arg6[%c1] : memref<2xf32, #tpu.memory_space<smem>>
    %50 = vector.broadcast %49 : f32 to vector<8x8xf32>
    %51 = arith.addf %48, %50 : vector<8x8xf32>
    %cst_24 = arith.constant 0.000000e+00 : f32
    %52 = vector.broadcast %cst_24 : f32 to vector<8x8xf32>
    %53 = arith.cmpf oge, %51, %52 : vector<8x8xf32>
    %cst_25 = arith.constant 0.00999999977 : f32
    %54 = vector.broadcast %cst_25 : f32 to vector<8x8xf32>
    %55 = arith.mulf %54, %51 : vector<8x8xf32>
    %56 = arith.select %53, %51, %55 : vector<8x8xi1>, vector<8x8xf32>
    %cst_26 = arith.constant 0.000000e+00 : f32
    %57 = vector.broadcast %cst_26 : f32 to vector<8x8xf32>
    %58 = arith.cmpf ogt, %10, %57 : vector<8x8xf32>
    %cst_27 = arith.constant -1.000000e+30 : f32
    %59 = vector.broadcast %cst_27 : f32 to vector<8x8xf32>
    %60 = arith.select %58, %56, %59 : vector<8x8xi1>, vector<8x8xf32>
    %cst_28 = arith.constant dense<0xFF800000> : vector<8xf32>
    %61 = vector.multi_reduction <maximumf>, %60, %cst_28 [1] : vector<8x8xf32> to vector<8xf32>
    %62 = vector.shape_cast %61 : vector<8xf32> to vector<8x1xf32>
    %63 = vector.broadcast %62 : vector<8x1xf32> to vector<8x8xf32>
    %64 = arith.subf %60, %63 : vector<8x8xf32>
    %65 = math.exp %64 : vector<8x8xf32>
    %66 = arith.mulf %65, %10 : vector<8x8xf32>
    %cst_29 = arith.constant dense<0.000000e+00> : vector<8xf32>
    %67 = vector.multi_reduction <add>, %66, %cst_29 [1] : vector<8x8xf32> to vector<8xf32>
    %68 = vector.shape_cast %67 : vector<8xf32> to vector<8x1xf32>
    %cst_30 = arith.constant 1.000000e-30 : f32
    %69 = vector.broadcast %cst_30 : f32 to vector<8x1xf32>
    %70 = arith.maximumf %68, %69 : vector<8x1xf32>
    %71 = tpu.reciprocal %70 {approx = true} : vector<8x1xf32> -> vector<8x1xf32>
    %72 = vector.broadcast %71 : vector<8x1xf32> to vector<8x8xf32>
    %73 = arith.mulf %66, %72 : vector<8x8xf32>
    %74 = vector.extract_strided_slice %5 {offsets = [0, 8], sizes = [8, 8], strides = [1, 1]} : vector<8x16xf32> to vector<8x8xf32>
    %cst_31 = arith.constant dense<0.000000e+00> : vector<8x8xf32>
    %75 = tpu.matmul %73, %74, %cst_31 {dimension_numbers = #tpu.dot_dimension_numbers<[1], [0], [0], [1], [0, 0, 1, 1], [], []>} : vector<8x8xf32>, vector<8x8xf32>, vector<8x8xf32> -> vector<8x8xf32>
    %c0_32 = arith.constant 0 : index
    %c8 = arith.constant 8 : index
    %76 = vector.load %arg7[%c0_32, %c8] : memref<8x16xf32, #tpu.memory_space<vmem>>, vector<8x8xf32>
    tpu.vector_store %arg7[%c0_32, %c8], %75 {strides = array<i32>} : memref<8x16xf32, #tpu.memory_space<vmem>>, vector<8x8xf32>,
    return
  }
}

module attributes {stable_mosaic.version = 11 : i64} {
  func.func @_gat_layer_kernel(%arg0: memref<8x16xf32, #tpu.memory_space<vmem>>, %arg1: memref<16x8xf32, #tpu.memory_space<vmem>>, %arg2: memref<1x8xf32, #tpu.memory_space<vmem>>, %arg3: memref<2x8xf32, #tpu.memory_space<vmem>>, %arg4: memref<8x2xf32, #tpu.memory_space<vmem>>, %arg5: memref<8x8xf32, #tpu.memory_space<vmem>>, %arg6: memref<2xf32, #tpu.memory_space<smem>>, %arg7: memref<8x8xf32, #tpu.memory_space<vmem>>) attributes {dimension_semantics = [], scalar_prefetch = 0 : i64, scratch_operands = 0 : i64, tpu.core_type = #tpu.core_type<tc>} {
    %c0 = arith.constant 0 : index
    %c0_0 = arith.constant 0 : index
    %0 = vector.load %arg0[%c0, %c0_0] : memref<8x16xf32, #tpu.memory_space<vmem>>, vector<8x16xf32>
    %c0_1 = arith.constant 0 : index
    %c0_2 = arith.constant 0 : index
    %1 = vector.load %arg1[%c0_1, %c0_2] : memref<16x8xf32, #tpu.memory_space<vmem>>, vector<16x8xf32>
    %cst = arith.constant dense<0.000000e+00> : vector<8x8xf32>
    %2 = tpu.matmul %0, %1, %cst {dimension_numbers = #tpu.dot_dimension_numbers<[1], [0], [0], [1], [0, 0, 1, 1], [], []>} : vector<8x16xf32>, vector<16x8xf32>, vector<8x8xf32> -> vector<8x8xf32>
    %c0_3 = arith.constant 0 : index
    %c0_4 = arith.constant 0 : index
    %3 = vector.load %arg2[%c0_3, %c0_4] : memref<1x8xf32, #tpu.memory_space<vmem>>, vector<1x8xf32>
    %4 = vector.broadcast %3 : vector<1x8xf32> to vector<8x8xf32>
    %5 = arith.addf %2, %4 : vector<8x8xf32>
    %c0_5 = arith.constant 0 : index
    %c0_6 = arith.constant 0 : index
    %6 = vector.load %arg3[%c0_5, %c0_6] : memref<2x8xf32, #tpu.memory_space<vmem>>, vector<2x8xf32>
    %cst_7 = arith.constant dense<0.000000e+00> : vector<2x8xf32>
    %7 = tpu.matmul %6, %5, %cst_7 {dimension_numbers = #tpu.dot_dimension_numbers<[1], [1], [0], [0], [0, 0, 1, 0], [], []>} : vector<2x8xf32>, vector<8x8xf32>, vector<2x8xf32> -> vector<2x8xf32>
    %c0_8 = arith.constant 0 : index
    %c0_9 = arith.constant 0 : index
    %8 = vector.load %arg4[%c0_8, %c0_9] : memref<8x2xf32, #tpu.memory_space<vmem>>, vector<8x2xf32>
    %cst_10 = arith.constant dense<0.000000e+00> : vector<8x2xf32>
    %9 = tpu.matmul %5, %8, %cst_10 {dimension_numbers = #tpu.dot_dimension_numbers<[1], [0], [0], [1], [0, 0, 1, 1], [], []>} : vector<8x8xf32>, vector<8x2xf32>, vector<8x2xf32> -> vector<8x2xf32>
    %c0_11 = arith.constant 0 : index
    %c0_12 = arith.constant 0 : index
    %10 = vector.load %arg5[%c0_11, %c0_12] : memref<8x8xf32, #tpu.memory_space<vmem>>, vector<8x8xf32>
    %11 = vector.extract_strided_slice %7 {offsets = [0, 0], sizes = [1, 8], strides = [1, 1]} : vector<2x8xf32> to vector<1x8xf32>
    %12 = vector.extract_strided_slice %9 {offsets = [0, 0], sizes = [8, 1], strides = [1, 1]} : vector<8x2xf32> to vector<8x1xf32>
    %13 = vector.broadcast %11 : vector<1x8xf32> to vector<8x8xf32>
    %14 = vector.broadcast %12 : vector<8x1xf32> to vector<8x8xf32>
    %15 = arith.addf %13, %14 : vector<8x8xf32>
    %c0_13 = arith.constant 0 : index
    %16 = memref.load %arg6[%c0_13] : memref<2xf32, #tpu.memory_space<smem>>
    %17 = vector.broadcast %16 : f32 to vector<8x8xf32>
    %18 = arith.addf %15, %17 : vector<8x8xf32>
    %cst_14 = arith.constant 0.000000e+00 : f32
    %19 = vector.broadcast %cst_14 : f32 to vector<8x8xf32>
    %20 = arith.cmpf oge, %18, %19 : vector<8x8xf32>
    %cst_15 = arith.constant 0.00999999977 : f32
    %21 = vector.broadcast %cst_15 : f32 to vector<8x8xf32>
    %22 = arith.mulf %21, %18 : vector<8x8xf32>
    %23 = arith.select %20, %18, %22 : vector<8x8xi1>, vector<8x8xf32>
    %cst_16 = arith.constant 0.000000e+00 : f32
    %24 = vector.broadcast %cst_16 : f32 to vector<8x8xf32>
    %25 = arith.cmpf ogt, %10, %24 : vector<8x8xf32>
    %cst_17 = arith.constant -1.000000e+30 : f32
    %26 = vector.broadcast %cst_17 : f32 to vector<8x8xf32>
    %27 = arith.select %25, %23, %26 : vector<8x8xi1>, vector<8x8xf32>
    %cst_18 = arith.constant dense<0xFF800000> : vector<8xf32>
    %28 = vector.multi_reduction <maximumf>, %27, %cst_18 [1] : vector<8x8xf32> to vector<8xf32>
    %29 = vector.shape_cast %28 : vector<8xf32> to vector<8x1xf32>
    %30 = vector.broadcast %29 : vector<8x1xf32> to vector<8x8xf32>
    %31 = arith.subf %27, %30 : vector<8x8xf32>
    %32 = math.exp %31 : vector<8x8xf32>
    %33 = arith.mulf %32, %10 : vector<8x8xf32>
    %cst_19 = arith.constant dense<0.000000e+00> : vector<8xf32>
    %34 = vector.multi_reduction <add>, %33, %cst_19 [1] : vector<8x8xf32> to vector<8xf32>
    %35 = vector.shape_cast %34 : vector<8xf32> to vector<8x1xf32>
    %cst_20 = arith.constant 1.000000e-30 : f32
    %36 = vector.broadcast %cst_20 : f32 to vector<8x1xf32>
    %37 = arith.maximumf %35, %36 : vector<8x1xf32>
    %38 = tpu.reciprocal %37 {approx = true} : vector<8x1xf32> -> vector<8x1xf32>
    %39 = vector.broadcast %38 : vector<8x1xf32> to vector<8x8xf32>
    %40 = arith.mulf %33, %39 : vector<8x8xf32>
    %41 = vector.extract_strided_slice %5 {offsets = [0, 0], sizes = [8, 4], strides = [1, 1]} : vector<8x8xf32> to vector<8x4xf32>
    %cst_21 = arith.constant dense<0.000000e+00> : vector<8x4xf32>
    %42 = tpu.matmul %40, %41, %cst_21 {dimension_numbers = #tpu.dot_dimension_numbers<[1], [0], [0], [1], [0, 0, 1, 1], [], []>} : vector<8x8xf32>, vector<8x4xf32>, vector<8x4xf32> -> vector<8x4xf32>
    %c0_22 = arith.constant 0 : index
    %c0_23 = arith.constant 0 : index
    %43 = vector.load %arg7[%c0_22, %c0_23] : memref<8x8xf32, #tpu.memory_space<vmem>>, vector<8x4xf32>
    tpu.vector_store %arg7[%c0_22, %c0_23], %42 {strides = array<i32>} : memref<8x8xf32, #tpu.memory_space<vmem>>, vector<8x4xf32>,
    %44 = vector.extract_strided_slice %7 {offsets = [1, 0], sizes = [1, 8], strides = [1, 1]} : vector<2x8xf32> to vector<1x8xf32>
    %45 = vector.extract_strided_slice %9 {offsets = [0, 1], sizes = [8, 1], strides = [1, 1]} : vector<8x2xf32> to vector<8x1xf32>
    %46 = vector.broadcast %44 : vector<1x8xf32> to vector<8x8xf32>
    %47 = vector.broadcast %45 : vector<8x1xf32> to vector<8x8xf32>
    %48 = arith.addf %46, %47 : vector<8x8xf32>
    %c1 = arith.constant 1 : index
    %49 = memref.load %arg6[%c1] : memref<2xf32, #tpu.memory_space<smem>>
    %50 = vector.broadcast %49 : f32 to vector<8x8xf32>
    %51 = arith.addf %48, %50 : vector<8x8xf32>
    %cst_24 = arith.constant 0.000000e+00 : f32
    %52 = vector.broadcast %cst_24 : f32 to vector<8x8xf32>
    %53 = arith.cmpf oge, %51, %52 : vector<8x8xf32>
    %cst_25 = arith.constant 0.00999999977 : f32
    %54 = vector.broadcast %cst_25 : f32 to vector<8x8xf32>
    %55 = arith.mulf %54, %51 : vector<8x8xf32>
    %56 = arith.select %53, %51, %55 : vector<8x8xi1>, vector<8x8xf32>
    %cst_26 = arith.constant 0.000000e+00 : f32
    %57 = vector.broadcast %cst_26 : f32 to vector<8x8xf32>
    %58 = arith.cmpf ogt, %10, %57 : vector<8x8xf32>
    %cst_27 = arith.constant -1.000000e+30 : f32
    %59 = vector.broadcast %cst_27 : f32 to vector<8x8xf32>
    %60 = arith.select %58, %56, %59 : vector<8x8xi1>, vector<8x8xf32>
    %cst_28 = arith.constant dense<0xFF800000> : vector<8xf32>
    %61 = vector.multi_reduction <maximumf>, %60, %cst_28 [1] : vector<8x8xf32> to vector<8xf32>
    %62 = vector.shape_cast %61 : vector<8xf32> to vector<8x1xf32>
    %63 = vector.broadcast %62 : vector<8x1xf32> to vector<8x8xf32>
    %64 = arith.subf %60, %63 : vector<8x8xf32>
    %65 = math.exp %64 : vector<8x8xf32>
    %66 = arith.mulf %65, %10 : vector<8x8xf32>
    %cst_29 = arith.constant dense<0.000000e+00> : vector<8xf32>
    %67 = vector.multi_reduction <add>, %66, %cst_29 [1] : vector<8x8xf32> to vector<8xf32>
    %68 = vector.shape_cast %67 : vector<8xf32> to vector<8x1xf32>
    %cst_30 = arith.constant 1.000000e-30 : f32
    %69 = vector.broadcast %cst_30 : f32 to vector<8x1xf32>
    %70 = arith.maximumf %68, %69 : vector<8x1xf32>
    %71 = tpu.reciprocal %70 {approx = true} : vector<8x1xf32> -> vector<8x1xf32>
    %72 = vector.broadcast %71 : vector<8x1xf32> to vector<8x8xf32>
    %73 = arith.mulf %66, %72 : vector<8x8xf32>
    %74 = vector.extract_strided_slice %5 {offsets = [0, 4], sizes = [8, 4], strides = [1, 1]} : vector<8x8xf32> to vector<8x4xf32>
    %cst_31 = arith.constant dense<0.000000e+00> : vector<8x4xf32>
    %75 = tpu.matmul %73, %74, %cst_31 {dimension_numbers = #tpu.dot_dimension_numbers<[1], [0], [0], [1], [0, 0, 1, 1], [], []>} : vector<8x8xf32>, vector<8x4xf32>, vector<8x4xf32> -> vector<8x4xf32>
    %c0_32 = arith.constant 0 : index
    %c4 = arith.constant 4 : index
    %76 = vector.load %arg7[%c0_32, %c4] : memref<8x8xf32, #tpu.memory_space<vmem>>, vector<8x4xf32>
    tpu.vector_store %arg7[%c0_32, %c4], %75 {strides = array<i32>} : memref<8x8xf32, #tpu.memory_space<vmem>>, vector<8x4xf32>,
    return
  }
}

module attributes {stable_mosaic.version = 11 : i64} {
  func.func @_gat_layer_kernel(%arg0: memref<8x16xf32, #tpu.memory_space<vmem>>, %arg1: memref<16x16xf32, #tpu.memory_space<vmem>>, %arg2: memref<1x16xf32, #tpu.memory_space<vmem>>, %arg3: memref<2x16xf32, #tpu.memory_space<vmem>>, %arg4: memref<16x2xf32, #tpu.memory_space<vmem>>, %arg5: memref<8x8xf32, #tpu.memory_space<vmem>>, %arg6: memref<2xf32, #tpu.memory_space<smem>>, %arg7: memref<8x16xf32, #tpu.memory_space<vmem>>) attributes {dimension_semantics = [], scalar_prefetch = 0 : i64, scratch_operands = 0 : i64, tpu.core_type = #tpu.core_type<tc>} {
    %c0 = arith.constant 0 : index
    %c0_0 = arith.constant 0 : index
    %0 = vector.load %arg0[%c0, %c0_0] : memref<8x16xf32, #tpu.memory_space<vmem>>, vector<8x16xf32>
    %c0_1 = arith.constant 0 : index
    %c0_2 = arith.constant 0 : index
    %1 = vector.load %arg1[%c0_1, %c0_2] : memref<16x16xf32, #tpu.memory_space<vmem>>, vector<16x16xf32>
    %cst = arith.constant dense<0.000000e+00> : vector<8x16xf32>
    %2 = tpu.matmul %0, %1, %cst {dimension_numbers = #tpu.dot_dimension_numbers<[1], [0], [0], [1], [0, 0, 1, 1], [], []>} : vector<8x16xf32>, vector<16x16xf32>, vector<8x16xf32> -> vector<8x16xf32>
    %c0_3 = arith.constant 0 : index
    %c0_4 = arith.constant 0 : index
    %3 = vector.load %arg2[%c0_3, %c0_4] : memref<1x16xf32, #tpu.memory_space<vmem>>, vector<1x16xf32>
    %4 = vector.broadcast %3 : vector<1x16xf32> to vector<8x16xf32>
    %5 = arith.addf %2, %4 : vector<8x16xf32>
    %c0_5 = arith.constant 0 : index
    %c0_6 = arith.constant 0 : index
    %6 = vector.load %arg3[%c0_5, %c0_6] : memref<2x16xf32, #tpu.memory_space<vmem>>, vector<2x16xf32>
    %cst_7 = arith.constant dense<0.000000e+00> : vector<2x8xf32>
    %7 = tpu.matmul %6, %5, %cst_7 {dimension_numbers = #tpu.dot_dimension_numbers<[1], [1], [0], [0], [0, 0, 1, 0], [], []>} : vector<2x16xf32>, vector<8x16xf32>, vector<2x8xf32> -> vector<2x8xf32>
    %c0_8 = arith.constant 0 : index
    %c0_9 = arith.constant 0 : index
    %8 = vector.load %arg4[%c0_8, %c0_9] : memref<16x2xf32, #tpu.memory_space<vmem>>, vector<16x2xf32>
    %cst_10 = arith.constant dense<0.000000e+00> : vector<8x2xf32>
    %9 = tpu.matmul %5, %8, %cst_10 {dimension_numbers = #tpu.dot_dimension_numbers<[1], [0], [0], [1], [0, 0, 1, 1], [], []>} : vector<8x16xf32>, vector<16x2xf32>, vector<8x2xf32> -> vector<8x2xf32>
    %c0_11 = arith.constant 0 : index
    %c0_12 = arith.constant 0 : index
    %10 = vector.load %arg5[%c0_11, %c0_12] : memref<8x8xf32, #tpu.memory_space<vmem>>, vector<8x8xf32>
    %11 = vector.extract_strided_slice %7 {offsets = [0, 0], sizes = [1, 8], strides = [1, 1]} : vector<2x8xf32> to vector<1x8xf32>
    %12 = vector.extract_strided_slice %9 {offsets = [0, 0], sizes = [8, 1], strides = [1, 1]} : vector<8x2xf32> to vector<8x1xf32>
    %13 = vector.broadcast %11 : vector<1x8xf32> to vector<8x8xf32>
    %14 = vector.broadcast %12 : vector<8x1xf32> to vector<8x8xf32>
    %15 = arith.addf %13, %14 : vector<8x8xf32>
    %c0_13 = arith.constant 0 : index
    %16 = memref.load %arg6[%c0_13] : memref<2xf32, #tpu.memory_space<smem>>
    %17 = vector.broadcast %16 : f32 to vector<8x8xf32>
    %18 = arith.addf %15, %17 : vector<8x8xf32>
    %cst_14 = arith.constant 0.000000e+00 : f32
    %19 = vector.broadcast %cst_14 : f32 to vector<8x8xf32>
    %20 = arith.cmpf oge, %18, %19 : vector<8x8xf32>
    %cst_15 = arith.constant 0.00999999977 : f32
    %21 = vector.broadcast %cst_15 : f32 to vector<8x8xf32>
    %22 = arith.mulf %21, %18 : vector<8x8xf32>
    %23 = arith.select %20, %18, %22 : vector<8x8xi1>, vector<8x8xf32>
    %cst_16 = arith.constant 0.000000e+00 : f32
    %24 = vector.broadcast %cst_16 : f32 to vector<8x8xf32>
    %25 = arith.cmpf ogt, %10, %24 : vector<8x8xf32>
    %cst_17 = arith.constant -1.000000e+30 : f32
    %26 = vector.broadcast %cst_17 : f32 to vector<8x8xf32>
    %27 = arith.select %25, %23, %26 : vector<8x8xi1>, vector<8x8xf32>
    %cst_18 = arith.constant dense<0xFF800000> : vector<8xf32>
    %28 = vector.multi_reduction <maximumf>, %27, %cst_18 [1] : vector<8x8xf32> to vector<8xf32>
    %29 = vector.shape_cast %28 : vector<8xf32> to vector<8x1xf32>
    %30 = vector.broadcast %29 : vector<8x1xf32> to vector<8x8xf32>
    %31 = arith.subf %27, %30 : vector<8x8xf32>
    %32 = math.exp %31 : vector<8x8xf32>
    %33 = arith.mulf %32, %10 : vector<8x8xf32>
    %cst_19 = arith.constant dense<0.000000e+00> : vector<8xf32>
    %34 = vector.multi_reduction <add>, %33, %cst_19 [1] : vector<8x8xf32> to vector<8xf32>
    %35 = vector.shape_cast %34 : vector<8xf32> to vector<8x1xf32>
    %cst_20 = arith.constant 1.000000e-30 : f32
    %36 = vector.broadcast %cst_20 : f32 to vector<8x1xf32>
    %37 = arith.maximumf %35, %36 : vector<8x1xf32>
    %38 = tpu.reciprocal %37 {approx = true} : vector<8x1xf32> -> vector<8x1xf32>
    %39 = vector.broadcast %38 : vector<8x1xf32> to vector<8x8xf32>
    %40 = arith.mulf %33, %39 : vector<8x8xf32>
    %41 = vector.extract_strided_slice %5 {offsets = [0, 0], sizes = [8, 8], strides = [1, 1]} : vector<8x16xf32> to vector<8x8xf32>
    %cst_21 = arith.constant dense<0.000000e+00> : vector<8x8xf32>
    %42 = tpu.matmul %40, %41, %cst_21 {dimension_numbers = #tpu.dot_dimension_numbers<[1], [0], [0], [1], [0, 0, 1, 1], [], []>} : vector<8x8xf32>, vector<8x8xf32>, vector<8x8xf32> -> vector<8x8xf32>
    %c0_22 = arith.constant 0 : index
    %c0_23 = arith.constant 0 : index
    %43 = vector.load %arg7[%c0_22, %c0_23] : memref<8x16xf32, #tpu.memory_space<vmem>>, vector<8x8xf32>
    tpu.vector_store %arg7[%c0_22, %c0_23], %42 {strides = array<i32>} : memref<8x16xf32, #tpu.memory_space<vmem>>, vector<8x8xf32>,
    %44 = vector.extract_strided_slice %7 {offsets = [1, 0], sizes = [1, 8], strides = [1, 1]} : vector<2x8xf32> to vector<1x8xf32>
    %45 = vector.extract_strided_slice %9 {offsets = [0, 1], sizes = [8, 1], strides = [1, 1]} : vector<8x2xf32> to vector<8x1xf32>
    %46 = vector.broadcast %44 : vector<1x8xf32> to vector<8x8xf32>
    %47 = vector.broadcast %45 : vector<8x1xf32> to vector<8x8xf32>
    %48 = arith.addf %46, %47 : vector<8x8xf32>
    %c1 = arith.constant 1 : index
    %49 = memref.load %arg6[%c1] : memref<2xf32, #tpu.memory_space<smem>>
    %50 = vector.broadcast %49 : f32 to vector<8x8xf32>
    %51 = arith.addf %48, %50 : vector<8x8xf32>
    %cst_24 = arith.constant 0.000000e+00 : f32
    %52 = vector.broadcast %cst_24 : f32 to vector<8x8xf32>
    %53 = arith.cmpf oge, %51, %52 : vector<8x8xf32>
    %cst_25 = arith.constant 0.00999999977 : f32
    %54 = vector.broadcast %cst_25 : f32 to vector<8x8xf32>
    %55 = arith.mulf %54, %51 : vector<8x8xf32>
    %56 = arith.select %53, %51, %55 : vector<8x8xi1>, vector<8x8xf32>
    %cst_26 = arith.constant 0.000000e+00 : f32
    %57 = vector.broadcast %cst_26 : f32 to vector<8x8xf32>
    %58 = arith.cmpf ogt, %10, %57 : vector<8x8xf32>
    %cst_27 = arith.constant -1.000000e+30 : f32
    %59 = vector.broadcast %cst_27 : f32 to vector<8x8xf32>
    %60 = arith.select %58, %56, %59 : vector<8x8xi1>, vector<8x8xf32>
    %cst_28 = arith.constant dense<0xFF800000> : vector<8xf32>
    %61 = vector.multi_reduction <maximumf>, %60, %cst_28 [1] : vector<8x8xf32> to vector<8xf32>
    %62 = vector.shape_cast %61 : vector<8xf32> to vector<8x1xf32>
    %63 = vector.broadcast %62 : vector<8x1xf32> to vector<8x8xf32>
    %64 = arith.subf %60, %63 : vector<8x8xf32>
    %65 = math.exp %64 : vector<8x8xf32>
    %66 = arith.mulf %65, %10 : vector<8x8xf32>
    %cst_29 = arith.constant dense<0.000000e+00> : vector<8xf32>
    %67 = vector.multi_reduction <add>, %66, %cst_29 [1] : vector<8x8xf32> to vector<8xf32>
    %68 = vector.shape_cast %67 : vector<8xf32> to vector<8x1xf32>
    %cst_30 = arith.constant 1.000000e-30 : f32
    %69 = vector.broadcast %cst_30 : f32 to vector<8x1xf32>
    %70 = arith.maximumf %68, %69 : vector<8x1xf32>
    %71 = tpu.reciprocal %70 {approx = true} : vector<8x1xf32> -> vector<8x1xf32>
    %72 = vector.broadcast %71 : vector<8x1xf32> to vector<8x8xf32>
    %73 = arith.mulf %66, %72 : vector<8x8xf32>
    %74 = vector.extract_strided_slice %5 {offsets = [0, 8], sizes = [8, 8], strides = [1, 1]} : vector<8x16xf32> to vector<8x8xf32>
    %cst_31 = arith.constant dense<0.000000e+00> : vector<8x8xf32>
    %75 = tpu.matmul %73, %74, %cst_31 {dimension_numbers = #tpu.dot_dimension_numbers<[1], [0], [0], [1], [0, 0, 1, 1], [], []>} : vector<8x8xf32>, vector<8x8xf32>, vector<8x8xf32> -> vector<8x8xf32>
    %c0_32 = arith.constant 0 : index
    %c8 = arith.constant 8 : index
    %76 = vector.load %arg7[%c0_32, %c8] : memref<8x16xf32, #tpu.memory_space<vmem>>, vector<8x8xf32>
    tpu.vector_store %arg7[%c0_32, %c8], %75 {strides = array<i32>} : memref<8x16xf32, #tpu.memory_space<vmem>>, vector<8x8xf32>,
    return
  }
}

</mosaic_0001>

<llo_original>
// kernel: _lambda_.5
$region0: #{_lambda_.5}
  #allocation0 [shape = 'u32[]', space=smem, size = 0x4, offset = 0x4, fixed_abs, tag = 'smem constant byte address 0x4 - core index']
  #allocation1 [shape = 'u32[144,128]{1,0:T(1,128)}', space=vmem, size = 0x12000, scoped, tag = 'internal scratch']
  %s0 = inlined_call_operand.vmem [shape: f32[8,16], index: 0, kind: input, shape index: {}]
  %s1 = inlined_call_operand.vmem [shape: f32[16,8], index: 1, kind: input, shape index: {}]
  %s2 = inlined_call_operand.vmem [shape: f32[1,8], index: 2, kind: input, shape index: {}]
  %s3 = inlined_call_operand.vmem [shape: f32[2,8], index: 3, kind: input, shape index: {}]
  %s4 = inlined_call_operand.vmem [shape: f32[8,2], index: 4, kind: input, shape index: {}]
  %s5 = inlined_call_operand.vmem [shape: f32[8,8], index: 5, kind: input, shape index: {}]
  %s6 = inlined_call_operand.vmem [shape: f32[2], index: 6, kind: input, shape index: {}]
  %s7 = inlined_call_operand.vmem [shape: f32[8,8], index: 7, kind: output, shape index: {}]
  %s8 = sld [smem:[#allocation0]]
  $region42: #{_lambda_.5} parent=0
    _
  %s10 = ssub.s32 1, %s8
  %s11 = scalar_select 0, %s10, %s8
  $region1: #{_lambda_.5} parent=0
    #allocation2 [shape = 'u8[512]{0}', space=smem, size = 0x200, scoped, tag = 'input window, operand 6, single buffered']
    #allocation3 [shape = 's32[1]{0}', space=sflag, size = 0x4, scoped, tag = 'scoped memory for _lambda_.5']
    %12 = vsyncpa [#allocation3], 0
    // Predicated region
    $region2: #{_lambda_.5} parent=1 // pred_check
      _
    $region3: #{_lambda_.5} parent=1 // pred_check_branch
      %14 = sbr.rel (0) target = $region5
    $region4: #{_lambda_.5} parent=1 // pred_region
      _
    $region5: #{_lambda_.5} parent=1 // pred_fallthru
      _
    // Predicated region
    $region6: #{_lambda_.5} parent=1 // pred_check
      _
    $region7: #{_lambda_.5} parent=1 // pred_check_branch
      %16 = sbr.rel (0) target = $region9
    $region8: #{_lambda_.5} parent=1 // pred_region
      _
    $region9: #{_lambda_.5} parent=1 // pred_fallthru
      _
    // Predicated region
    $region10: #{_lambda_.5} parent=1 // pred_check
      _
    $region11: #{_lambda_.5} parent=1 // pred_check_branch
      %18 = sbr.rel (0) target = $region13
    $region12: #{_lambda_.5} parent=1 // pred_region
      _
    $region13: #{_lambda_.5} parent=1 // pred_fallthru
      _
    // Predicated region
    $region14: #{_lambda_.5} parent=1 // pred_check
      _
    $region15: #{_lambda_.5} parent=1 // pred_check_branch
      %20 = sbr.rel (0) target = $region17
    $region16: #{_lambda_.5} parent=1 // pred_region
      _
    $region17: #{_lambda_.5} parent=1 // pred_fallthru
      _
    // Predicated region
    $region18: #{_lambda_.5} parent=1 // pred_check
      _
    $region19: #{_lambda_.5} parent=1 // pred_check_branch
      %22 = sbr.rel (0) target = $region21
    $region20: #{_lambda_.5} parent=1 // pred_region
      _
    $region21: #{_lambda_.5} parent=1 // pred_fallthru
      _
    // Predicated region
    $region22: #{_lambda_.5} parent=1 // pred_check
      _
    $region23: #{_lambda_.5} parent=1 // pred_check_branch
      %24 = sbr.rel (0) target = $region25
    $region24: #{_lambda_.5} parent=1 // pred_region
      _
    $region25: #{_lambda_.5} parent=1 // pred_fallthru
      _
    // Predicated region
    $region26: #{_lambda_.5} parent=1 // pred_check
      _
    $region27: #{_lambda_.5} parent=1 // pred_check_branch
      %26 = sbr.rel (0) target = $region29
    $region28: #{_lambda_.5} parent=1 // pred_region
      %s28 = ssub.s32 16, 16
      %29 = vsyncadd [#allocation3], %s28
      %s31 = sshll.u32 %s6, 4
      %s32 = int_to_ptr.vmem [resolvable:$true] %s31
      %34 = dma.vmem_to_smem %s32, 16, [#allocation2], [#allocation3]
    $region29: #{_lambda_.5} parent=1 // pred_fallthru
      _
    // Predicated region
    $region30: #{_lambda_.5} parent=1 // pred_check
      _
    $region31: #{_lambda_.5} parent=1 // pred_check_branch
      %36 = sbr.rel (0) target = $region33
    $region32: #{_lambda_.5} parent=1 // pred_region
      %37 = dma.done [#allocation3], 16
    $region33: #{_lambda_.5} parent=1 // pred_fallthru
      _
    %38 = sfence
    %v39 = vld [vmem:[%s0] sm:$0xff]
    %v40 = vld [vmem:[%s1] sm:$0xff]
    %v41 = vld [vmem:[%s1 + $0x8] sm:$0xff]
    %v42 = vld [vmem:[%s2] sm:$0x1]
    %v44 = vlaneseq
    %v45 = vshrl.u32 %v44, 7
    %v46 = vsub.s32 0, %v45
    %v47 = vrot.slane %v42, %v46
    %vm49 = vcmask 130048
    %v51 = vsel %vm49, %v39, 0
    %53 = vmatprep.subr.mxu0 0.0
    %54 = vmatpush1.msra.mxu0 %v40
    %55 = vmatprep.subr.mxu0 0.0
    %56 = vmatpush1.msra.mxu0 %v41
    %57 = vmatprep.subr.mxu0 0.0
    %58 = vmatpush1.msra.mxu0 0.0
    %59 = vmatprep.subr.mxu0 0.0
    %60 = vmatpush1.msra.mxu0 0.0
    %61 = vmatprep.subr.mxu0 0.0
    %62 = vmatpush1.msra.mxu0 0.0
    %63 = vmatprep.subr.mxu0 0.0
    %64 = vmatpush1.msra.mxu0 0.0
    %65 = vmatprep.subr.mxu0 0.0
    %66 = vmatpush1.msra.mxu0 0.0
    %67 = vmatprep.subr.mxu0 0.0
    %68 = vmatpush1.msra.mxu0 0.0
    %69 = vmatprep.subr.mxu0 0.0
    %70 = vmatpush1.msra.mxu0 0.0
    %71 = vmatprep.subr.mxu0 0.0
    %72 = vmatpush1.msra.mxu0 0.0
    %73 = vmatprep.subr.mxu0 0.0
    %74 = vmatpush1.msra.mxu0 0.0
    %75 = vmatprep.subr.mxu0 0.0
    %76 = vmatpush1.msra.mxu0 0.0
    %77 = vmatprep.subr.mxu0 0.0
    %78 = vmatpush1.msra.mxu0 0.0
    %79 = vmatprep.subr.mxu0 0.0
    %80 = vmatpush1.msra.mxu0 0.0
    %81 = vmatprep.subr.mxu0 0.0
    %82 = vmatpush1.msra.mxu0 0.0
    %83 = vmatprep.subr.mxu0 0.0
    %84 = vmatpush1.msra.mxu0 0.0
    %85 = vmatprep.subr.mxu0 0.0
    %86 = vmatpush1.msra.mxu0 0.0
    %87 = vmatprep.subr.mxu0 0.0
    %88 = vmatpush1.msra.mxu0 0.0
    %89 = vmatprep.subr.mxu0 0.0
    %90 = vmatpush1.msra.mxu0 0.0
    %91 = vmatprep.subr.mxu0 0.0
    %92 = vmatpush1.msra.mxu0 0.0
    %93 = vmatprep.subr.mxu0 0.0
    %94 = vmatpush1.msra.mxu0 0.0
    %95 = vmatprep.subr.mxu0 0.0
    %96 = vmatpush1.msra.mxu0 0.0
    %97 = vmatprep.subr.mxu0 0.0
    %98 = vmatpush1.msra.mxu0 0.0
    %99 = vmatprep.subr.mxu0 0.0
    %100 = vmatpush1.msra.mxu0 0.0
    %101 = vmatprep.subr.mxu0 0.0
    %102 = vmatpush1.msra.mxu0 0.0
    %103 = vmatprep.subr.mxu0 0.0
    %104 = vmatpush1.msra.mxu0 0.0
    %105 = vmatprep.subr.mxu0 0.0
    %106 = vmatpush1.msra.mxu0 0.0
    %107 = vmatprep.subr.mxu0 0.0
    %108 = vmatpush1.msra.mxu0 0.0
    %109 = vmatprep.subr.mxu0 0.0
    %110 = vmatpush1.msra.mxu0 0.0
    %111 = vmatprep.subr.mxu0 0.0
    %112 = vmatpush1.msra.mxu0 0.0
    %113 = vmatprep.subr.mxu0 0.0
    %114 = vmatpush1.msra.mxu0 0.0
    %115 = vmatprep.subr.mxu0 0.0
    %116 = vmatpush1.msra.mxu0 0.0
    %117 = vmatprep.mubr.f32.mxu0 0.0
    %118 = vmatmul.mubr.f32.gmra.mrb[0].mxu0 %v51
    %v119 = vpop.f32.mrb[0].mxu0
    %v120 = vadd.f32 %v47, %v119
    %v121 = vpop.f32.mrb[0].mxu0
    %122 = vdwg.mxu0
    %v123 = vld [vmem:[%s3] sm:$0x3]
    %vm124 = vcmask 64512
    %v126 = vsel %vm124, %v123, 0
    %v129 = vsel %vm124, %v120, 0
    %131 = vmatprep.subr.mxu0 0.0
    %132 = vmatpush1.xpose.msra.mxu0 %v129
    %133 = vmatprep.subr.mxu0 0.0
    %134 = vmatpush1.xpose.msra.mxu0 0.0
    %135 = vmatprep.subr.mxu0 0.0
    %136 = vmatpush1.xpose.msra.mxu0 0.0
    %137 = vmatprep.subr.mxu0 0.0
    %138 = vmatpush1.xpose.msra.mxu0 0.0
    %139 = vmatprep.subr.mxu0 0.0
    %140 = vmatpush1.xpose.msra.mxu0 0.0
    %141 = vmatprep.subr.mxu0 0.0
    %142 = vmatpush1.xpose.msra.mxu0 0.0
    %143 = vmatprep.subr.mxu0 0.0
    %144 = vmatpush1.xpose.msra.mxu0 0.0
    %145 = vmatprep.subr.mxu0 0.0
    %146 = vmatpush1.xpose.msra.mxu0 0.0
    %147 = vmatprep.subr.mxu0 0.0
    %148 = vmatpush1.xpose.msra.mxu0 0.0
    %149 = vmatprep.subr.mxu0 0.0
    %150 = vmatpush1.xpose.msra.mxu0 0.0
    %151 = vmatprep.subr.mxu0 0.0
    %152 = vmatpush1.xpose.msra.mxu0 0.0
    %153 = vmatprep.subr.mxu0 0.0
    %154 = vmatpush1.xpose.msra.mxu0 0.0
    %155 = vmatprep.subr.mxu0 0.0
    %156 = vmatpush1.xpose.msra.mxu0 0.0
    %157 = vmatprep.subr.mxu0 0.0
    %158 = vmatpush1.xpose.msra.mxu0 0.0
    %159 = vmatprep.subr.mxu0 0.0
    %160 = vmatpush1.xpose.msra.mxu0 0.0
    %161 = vmatprep.subr.mxu0 0.0
    %162 = vmatpush1.xpose.msra.mxu0 0.0
    %163 = vmatprep.subr.mxu0 0.0
    %164 = vmatpush1.xpose.msra.mxu0 0.0
    %165 = vmatprep.subr.mxu0 0.0
    %166 = vmatpush1.xpose.msra.mxu0 0.0
    %167 = vmatprep.subr.mxu0 0.0
    %168 = vmatpush1.xpose.msra.mxu0 0.0
    %169 = vmatprep.subr.mxu0 0.0
    %170 = vmatpush1.xpose.msra.mxu0 0.0
    %171 = vmatprep.subr.mxu0 0.0
    %172 = vmatpush1.xpose.msra.mxu0 0.0
    %173 = vmatprep.subr.mxu0 0.0
    %174 = vmatpush1.xpose.msra.mxu0 0.0
    %175 = vmatprep.subr.mxu0 0.0
    %176 = vmatpush1.xpose.msra.mxu0 0.0
    %177 = vmatprep.subr.mxu0 0.0
    %178 = vmatpush1.xpose.msra.mxu0 0.0
    %179 = vmatprep.subr.mxu0 0.0
    %180 = vmatpush1.xpose.msra.mxu0 0.0
    %181 = vmatprep.subr.mxu0 0.0
    %182 = vmatpush1.xpose.msra.mxu0 0.0
    %183 = vmatprep.subr.mxu0 0.0
    %184 = vmatpush1.xpose.msra.mxu0 0.0
    %185 = vmatprep.subr.mxu0 0.0
    %186 = vmatpush1.xpose.msra.mxu0 0.0
    %187 = vmatprep.subr.mxu0 0.0
    %188 = vmatpush1.xpose.msra.mxu0 0.0
    %189 = vmatprep.subr.mxu0 0.0
    %190 = vmatpush1.xpose.msra.mxu0 0.0
    %191 = vmatprep.subr.mxu0 0.0
    %192 = vmatpush1.xpose.msra.mxu0 0.0
    %193 = vmatprep.subr.mxu0 0.0
    %194 = vmatpush1.xpose.msra.mxu0 0.0
    %195 = vmatprep.mubr.f32.mxu0 0.0
    %196 = vmatmul.mubr.f32.gmra.mrb[0].mxu0 %v126
    %v197 = vpop.f32.mrb[0].mxu0
    %v198 = vadd.f32 0.0, %v197
    %v199 = vpop.f32.mrb[0].mxu0
    %200 = vdwg.mxu0
    %v201 = vld [vmem:[%s4] sm:$0xff]
    %202 = vmatprep.subr.mxu0 0.0
    %203 = vmatpush1.msra.mxu0 %v201
    %204 = vmatprep.subr.mxu0 0.0
    %205 = vmatpush1.msra.mxu0 0.0
    %206 = vmatprep.subr.mxu0 0.0
    %207 = vmatpush1.msra.mxu0 0.0
    %208 = vmatprep.subr.mxu0 0.0
    %209 = vmatpush1.msra.mxu0 0.0
    %210 = vmatprep.subr.mxu0 0.0
    %211 = vmatpush1.msra.mxu0 0.0
    %212 = vmatprep.subr.mxu0 0.0
    %213 = vmatpush1.msra.mxu0 0.0
    %214 = vmatprep.subr.mxu0 0.0
    %215 = vmatpush1.msra.mxu0 0.0
    %216 = vmatprep.subr.mxu0 0.0
    %217 = vmatpush1.msra.mxu0 0.0
    %218 = vmatprep.subr.mxu0 0.0
    %219 = vmatpush1.msra.mxu0 0.0
    %220 = vmatprep.subr.mxu0 0.0
    %221 = vmatpush1.msra.mxu0 0.0
    %222 = vmatprep.subr.mxu0 0.0
    %223 = vmatpush1.msra.mxu0 0.0
    %224 = vmatprep.subr.mxu0 0.0
    %225 = vmatpush1.msra.mxu0 0.0
    %226 = vmatprep.subr.mxu0 0.0
    %227 = vmatpush1.msra.mxu0 0.0
    %228 = vmatprep.subr.mxu0 0.0
    %229 = vmatpush1.msra.mxu0 0.0
    %230 = vmatprep.subr.mxu0 0.0
    %231 = vmatpush1.msra.mxu0 0.0
    %232 = vmatprep.subr.mxu0 0.0
    %233 = vmatpush1.msra.mxu0 0.0
    %234 = vmatprep.subr.mxu0 0.0
    %235 = vmatpush1.msra.mxu0 0.0
    %236 = vmatprep.subr.mxu0 0.0
    %237 = vmatpush1.msra.mxu0 0.0
    %238 = vmatprep.subr.mxu0 0.0
    %239 = vmatpush1.msra.mxu0 0.0
    %240 = vmatprep.subr.mxu0 0.0
    %241 = vmatpush1.msra.mxu0 0.0
    %242 = vmatprep.subr.mxu0 0.0
    %243 = vmatpush1.msra.mxu0 0.0
    %244 = vmatprep.subr.mxu0 0.0
    %245 = vmatpush1.msra.mxu0 0.0
    %246 = vmatprep.subr.mxu0 0.0
    %247 = vmatpush1.msra.mxu0 0.0
    %248 = vmatprep.subr.mxu0 0.0
    %249 = vmatpush1.msra.mxu0 0.0
    %250 = vmatprep.subr.mxu0 0.0
    %251 = vmatpush1.msra.mxu0 0.0
    %252 = vmatprep.subr.mxu0 0.0
    %253 = vmatpush1.msra.mxu0 0.0
    %254 = vmatprep.subr.mxu0 0.0
    %255 = vmatpush1.msra.mxu0 0.0
    %256 = vmatprep.subr.mxu0 0.0
    %257 = vmatpush1.msra.mxu0 0.0
    %258 = vmatprep.subr.mxu0 0.0
    %259 = vmatpush1.msra.mxu0 0.0
    %260 = vmatprep.subr.mxu0 0.0
    %261 = vmatpush1.msra.mxu0 0.0
    %262 = vmatprep.subr.mxu0 0.0
    %263 = vmatpush1.msra.mxu0 0.0
    %264 = vmatprep.subr.mxu0 0.0
    %265 = vmatpush1.msra.mxu0 0.0
    %266 = vmatprep.mubr.f32.mxu0 0.0
    %267 = vmatmul.mubr.f32.gmra.mrb[0].mxu0 %v129
    %v268 = vpop.f32.mrb[0].mxu0
    %v269 = vadd.f32 0.0, %v268
    %v270 = vpop.f32.mrb[0].mxu0
    %271 = vdwg.mxu0
    %v272 = vld [vmem:[%s5] sm:$0xff]
    %v273 = vlaneseq
    %v274 = vshrl.u32 %v273, 7
    %v275 = vsub.s32 0, %v274
    %v276 = vrot.slane %v198, %v275
    %278 = vset.pattern.permute.xlu0 0
    %279 = vperm.xlu0 %278, %v269
    %v280 = vpop.permute.xlu0 %279
    %v282 = vadd.f32 %v276, %v280
    %s283 = sld [smem:[#allocation2]]
    %v284 = vstv %s283
    %v285 = vadd.f32 %v282, %v284
    %vm286 = vcmp.ge.f32.partialorder %v285, 0.0
    %v287 = vmul.f32 %v285, 0.01
    %v288 = vsel %vm286, %v285, %v287
    %vm289 = vcmp.gt.f32.partialorder %v272, 0.0
    %v290 = vsel %vm289, %v288, -1e+30
    %v291 = vsel %vm124, %v290, -inf
    %292 = vmax.xlane.f32.xlu0 %v291
    %v293 = vpop.xlane.xlu0 %292
    %v294 = vsub.f32 %v290, %v293
    %v295 = vmul.f32 %v294, 1.442695
    %v296 = vpow.pop %v295
    %v297 = vmul.f32 %v296, %v272
    %v298 = vsel %vm124, %v297, 0.0
    %299 = vadd.xlane.f32.xlu0 %v298
    %v300 = vpop.xlane.xlu0 %299
    %v301 = vmax.f32 %v300, 1e-30
    %v302 = vrcp.pop %v301
    %v303 = vmul.f32 %v297, %v302
    %v305 = vsel %vm124, %v303, 0
    %307 = vmatprep.subr.mxu0 0.0
    %308 = vmatpush1.msra.mxu0 %v120
    %309 = vmatprep.subr.mxu0 0.0
    %310 = vmatpush1.msra.mxu0 0.0
    %311 = vmatprep.subr.mxu0 0.0
    %312 = vmatpush1.msra.mxu0 0.0
    %313 = vmatprep.subr.mxu0 0.0
    %314 = vmatpush1.msra.mxu0 0.0
    %315 = vmatprep.subr.mxu0 0.0
    %316 = vmatpush1.msra.mxu0 0.0
    %317 = vmatprep.subr.mxu0 0.0
    %318 = vmatpush1.msra.mxu0 0.0
    %319 = vmatprep.subr.mxu0 0.0
    %320 = vmatpush1.msra.mxu0 0.0
    %321 = vmatprep.subr.mxu0 0.0
    %322 = vmatpush1.msra.mxu0 0.0
    %323 = vmatprep.subr.mxu0 0.0
    %324 = vmatpush1.msra.mxu0 0.0
    %325 = vmatprep.subr.mxu0 0.0
    %326 = vmatpush1.msra.mxu0 0.0
    %327 = vmatprep.subr.mxu0 0.0
    %328 = vmatpush1.msra.mxu0 0.0
    %329 = vmatprep.subr.mxu0 0.0
    %330 = vmatpush1.msra.mxu0 0.0
    %331 = vmatprep.subr.mxu0 0.0
    %332 = vmatpush1.msra.mxu0 0.0
    %333 = vmatprep.subr.mxu0 0.0
    %334 = vmatpush1.msra.mxu0 0.0
    %335 = vmatprep.subr.mxu0 0.0
    %336 = vmatpush1.msra.mxu0 0.0
    %337 = vmatprep.subr.mxu0 0.0
    %338 = vmatpush1.msra.mxu0 0.0
    %339 = vmatprep.subr.mxu0 0.0
    %340 = vmatpush1.msra.mxu0 0.0
    %341 = vmatprep.subr.mxu0 0.0
    %342 = vmatpush1.msra.mxu0 0.0
    %343 = vmatprep.subr.mxu0 0.0
    %344 = vmatpush1.msra.mxu0 0.0
    %345 = vmatprep.subr.mxu0 0.0
    %346 = vmatpush1.msra.mxu0 0.0
    %347 = vmatprep.subr.mxu0 0.0
    %348 = vmatpush1.msra.mxu0 0.0
    %349 = vmatprep.subr.mxu0 0.0
    %350 = vmatpush1.msra.mxu0 0.0
    %351 = vmatprep.subr.mxu0 0.0
    %352 = vmatpush1.msra.mxu0 0.0
    %353 = vmatprep.subr.mxu0 0.0
    %354 = vmatpush1.msra.mxu0 0.0
    %355 = vmatprep.subr.mxu0 0.0
    %356 = vmatpush1.msra.mxu0 0.0
    %357 = vmatprep.subr.mxu0 0.0
    %358 = vmatpush1.msra.mxu0 0.0
    %359 = vmatprep.subr.mxu0 0.0
    %360 = vmatpush1.msra.mxu0 0.0
    %361 = vmatprep.subr.mxu0 0.0
    %362 = vmatpush1.msra.mxu0 0.0
    %363 = vmatprep.subr.mxu0 0.0
    %364 = vmatpush1.msra.mxu0 0.0
    %365 = vmatprep.subr.mxu0 0.0
    %366 = vmatpush1.msra.mxu0 0.0
    %367 = vmatprep.subr.mxu0 0.0
    %368 = vmatpush1.msra.mxu0 0.0
    %369 = vmatprep.subr.mxu0 0.0
    %370 = vmatpush1.msra.mxu0 0.0
    %371 = vmatprep.mubr.f32.mxu0 0.0
    %372 = vmatmul.mubr.f32.gmra.mrb[0].mxu0 %v305
    %v373 = vpop.f32.mrb[0].mxu0
    %v374 = vadd.f32 0.0, %v373
    %v375 = vpop.f32.mrb[0].mxu0
    %376 = vdwg.mxu0
    %vm377 = vcmask 31744
    %378 = vst.msk [vmem:[%s7] sm:$0xff] %vm377, %v374
    %v379 = vlaneseq
    %v380 = vshrl.u32 %v379, 7
    %v381 = vsub.s32 1, %v380
    %v382 = vrot.slane %v198, %v381
    %383 = vset.pattern.permute.xlu0 1
    %384 = vperm.xlu0 %383, %v269
    %v385 = vpop.permute.xlu0 %384
    %v387 = vadd.f32 %v382, %v385
    %s388 = sld [smem:[#allocation2 + $0x1]]
    %v389 = vstv %s388
    %v390 = vadd.f32 %v387, %v389
    %vm391 = vcmp.ge.f32.partialorder %v390, 0.0
    %v392 = vmul.f32 %v390, 0.01
    %v393 = vsel %vm391, %v390, %v392
    %v394 = vsel %vm289, %v393, -1e+30
    %v395 = vsel %vm124, %v394, -inf
    %396 = vmax.xlane.f32.xlu0 %v395
    %v397 = vpop.xlane.xlu0 %396
    %v398 = vsub.f32 %v394, %v397
    %v399 = vmul.f32 %v398, 1.442695
    %v400 = vpow.pop %v399
    %v401 = vmul.f32 %v400, %v272
    %v402 = vsel %vm124, %v401, 0.0
    %403 = vadd.xlane.f32.xlu0 %v402
    %v404 = vpop.xlane.xlu0 %403
    %v405 = vmax.f32 %v404, 1e-30
    %v406 = vrcp.pop %v405
    %v407 = vmul.f32 %v401, %v406
    %408 = vrot.lane.b32.xlu0 %v120, 124
    %v409 = vpop.permute.xlu0 %408
    %v412 = vsel %vm124, %v407, 0
    %414 = vmatprep.subr.mxu0 0.0
    %415 = vmatpush1.msra.mxu0 %v409
    %416 = vmatprep.subr.mxu0 0.0
    %417 = vmatpush1.msra.mxu0 0.0
    %418 = vmatprep.subr.mxu0 0.0
    %419 = vmatpush1.msra.mxu0 0.0
    %420 = vmatprep.subr.mxu0 0.0
    %421 = vmatpush1.msra.mxu0 0.0
    %422 = vmatprep.subr.mxu0 0.0
    %423 = vmatpush1.msra.mxu0 0.0
    %424 = vmatprep.subr.mxu0 0.0
    %425 = vmatpush1.msra.mxu0 0.0
    %426 = vmatprep.subr.mxu0 0.0
    %427 = vmatpush1.msra.mxu0 0.0
    %428 = vmatprep.subr.mxu0 0.0
    %429 = vmatpush1.msra.mxu0 0.0
    %430 = vmatprep.subr.mxu0 0.0
    %431 = vmatpush1.msra.mxu0 0.0
    %432 = vmatprep.subr.mxu0 0.0
    %433 = vmatpush1.msra.mxu0 0.0
    %434 = vmatprep.subr.mxu0 0.0
    %435 = vmatpush1.msra.mxu0 0.0
    %436 = vmatprep.subr.mxu0 0.0
    %437 = vmatpush1.msra.mxu0 0.0
    %438 = vmatprep.subr.mxu0 0.0
    %439 = vmatpush1.msra.mxu0 0.0
    %440 = vmatprep.subr.mxu0 0.0
    %441 = vmatpush1.msra.mxu0 0.0
    %442 = vmatprep.subr.mxu0 0.0
    %443 = vmatpush1.msra.mxu0 0.0
    %444 = vmatprep.subr.mxu0 0.0
    %445 = vmatpush1.msra.mxu0 0.0
    %446 = vmatprep.subr.mxu0 0.0
    %447 = vmatpush1.msra.mxu0 0.0
    %448 = vmatprep.subr.mxu0 0.0
    %449 = vmatpush1.msra.mxu0 0.0
    %450 = vmatprep.subr.mxu0 0.0
    %451 = vmatpush1.msra.mxu0 0.0
    %452 = vmatprep.subr.mxu0 0.0
    %453 = vmatpush1.msra.mxu0 0.0
    %454 = vmatprep.subr.mxu0 0.0
    %455 = vmatpush1.msra.mxu0 0.0
    %456 = vmatprep.subr.mxu0 0.0
    %457 = vmatpush1.msra.mxu0 0.0
    %458 = vmatprep.subr.mxu0 0.0
    %459 = vmatpush1.msra.mxu0 0.0
    %460 = vmatprep.subr.mxu0 0.0
    %461 = vmatpush1.msra.mxu0 0.0
    %462 = vmatprep.subr.mxu0 0.0
    %463 = vmatpush1.msra.mxu0 0.0
    %464 = vmatprep.subr.mxu0 0.0
    %465 = vmatpush1.msra.mxu0 0.0
    %466 = vmatprep.subr.mxu0 0.0
    %467 = vmatpush1.msra.mxu0 0.0
    %468 = vmatprep.subr.mxu0 0.0
    %469 = vmatpush1.msra.mxu0 0.0
    %470 = vmatprep.subr.mxu0 0.0
    %471 = vmatpush1.msra.mxu0 0.0
    %472 = vmatprep.subr.mxu0 0.0
    %473 = vmatpush1.msra.mxu0 0.0
    %474 = vmatprep.subr.mxu0 0.0
    %475 = vmatpush1.msra.mxu0 0.0
    %476 = vmatprep.subr.mxu0 0.0
    %477 = vmatpush1.msra.mxu0 0.0
    %478 = vmatprep.mubr.f32.mxu0 0.0
    %479 = vmatmul.mubr.f32.gmra.mrb[0].mxu0 %v412
    %v480 = vpop.f32.mrb[0].mxu0
    %v481 = vadd.f32 0.0, %v480
    %v482 = vpop.f32.mrb[0].mxu0
    %483 = vdwg.mxu0
    %485 = vrot.lane.b32.xlu0 %v481, 4
    %v486 = vpop.permute.xlu0 %485
    %vm488 = vcmask 64544
    %489 = vst.msk [vmem:[%s7] sm:$0xff] %vm488, %v486
    // Predicated region
    $region34: #{_lambda_.5} parent=1 // pred_check
      _
    $region35: #{_lambda_.5} parent=1 // pred_check_branch
      %491 = sbr.rel (0) target = $region37
    $region36: #{_lambda_.5} parent=1 // pred_region
      _
    $region37: #{_lambda_.5} parent=1 // pred_fallthru
      _
    // Predicated region
    $region38: #{_lambda_.5} parent=1 // pred_check
      _
    $region39: #{_lambda_.5} parent=1 // pred_check_branch
      %493 = sbr.rel (0) target = $region41
    $region40: #{_lambda_.5} parent=1 // pred_region
      _
    $region41: #{_lambda_.5} parent=1 // pred_fallthru
      _
    %494 = vsyncpa [#allocation3], 1

// kernel: _lambda_.4
$region0: #{_lambda_.4}
  #allocation0 [shape = 'u32[]', space=smem, size = 0x4, offset = 0x4, fixed_abs, tag = 'smem constant byte address 0x4 - core index']
  #allocation1 [shape = 'u32[144,128]{1,0:T(1,128)}', space=vmem, size = 0x12000, scoped, tag = 'internal scratch']
  %s0 = inlined_call_operand.vmem [shape: f32[8,16], index: 0, kind: input, shape index: {}]
  %s1 = inlined_call_operand.vmem [shape: f32[16,16], index: 1, kind: input, shape index: {}]
  %s2 = inlined_call_operand.vmem [shape: f32[1,16], index: 2, kind: input, shape index: {}]
  %s3 = inlined_call_operand.vmem [shape: f32[2,16], index: 3, kind: input, shape index: {}]
  %s4 = inlined_call_operand.vmem [shape: f32[16,2], index: 4, kind: input, shape index: {}]
  %s5 = inlined_call_operand.vmem [shape: f32[8,8], index: 5, kind: input, shape index: {}]
  %s6 = inlined_call_operand.vmem [shape: f32[2], index: 6, kind: input, shape index: {}]
  %s7 = inlined_call_operand.vmem [shape: f32[8,16], index: 7, kind: output, shape index: {}]
  %s8 = sld [smem:[#allocation0]]
  $region42: #{_lambda_.4} parent=0
    _
  %s10 = ssub.s32 1, %s8
  %s11 = scalar_select 0, %s10, %s8
  $region1: #{_lambda_.4} parent=0
    #allocation2 [shape = 'u8[512]{0}', space=smem, size = 0x200, scoped, tag = 'input window, operand 6, single buffered']
    #allocation3 [shape = 's32[1]{0}', space=sflag, size = 0x4, scoped, tag = 'scoped memory for _lambda_.4']
    %12 = vsyncpa [#allocation3], 0
    // Predicated region
    $region2: #{_lambda_.4} parent=1 // pred_check
      _
    $region3: #{_lambda_.4} parent=1 // pred_check_branch
      %14 = sbr.rel (0) target = $region5
    $region4: #{_lambda_.4} parent=1 // pred_region
      _
    $region5: #{_lambda_.4} parent=1 // pred_fallthru
      _
    // Predicated region
    $region6: #{_lambda_.4} parent=1 // pred_check
      _
    $region7: #{_lambda_.4} parent=1 // pred_check_branch
      %16 = sbr.rel (0) target = $region9
    $region8: #{_lambda_.4} parent=1 // pred_region
      _
    $region9: #{_lambda_.4} parent=1 // pred_fallthru
      _
    // Predicated region
    $region10: #{_lambda_.4} parent=1 // pred_check
      _
    $region11: #{_lambda_.4} parent=1 // pred_check_branch
      %18 = sbr.rel (0) target = $region13
    $region12: #{_lambda_.4} parent=1 // pred_region
      _
    $region13: #{_lambda_.4} parent=1 // pred_fallthru
      _
    // Predicated region
    $region14: #{_lambda_.4} parent=1 // pred_check
      _
    $region15: #{_lambda_.4} parent=1 // pred_check_branch
      %20 = sbr.rel (0) target = $region17
    $region16: #{_lambda_.4} parent=1 // pred_region
      _
    $region17: #{_lambda_.4} parent=1 // pred_fallthru
      _
    // Predicated region
    $region18: #{_lambda_.4} parent=1 // pred_check
      _
    $region19: #{_lambda_.4} parent=1 // pred_check_branch
      %22 = sbr.rel (0) target = $region21
    $region20: #{_lambda_.4} parent=1 // pred_region
      _
    $region21: #{_lambda_.4} parent=1 // pred_fallthru
      _
    // Predicated region
    $region22: #{_lambda_.4} parent=1 // pred_check
      _
    $region23: #{_lambda_.4} parent=1 // pred_check_branch
      %24 = sbr.rel (0) target = $region25
    $region24: #{_lambda_.4} parent=1 // pred_region
      _
    $region25: #{_lambda_.4} parent=1 // pred_fallthru
      _
    // Predicated region
    $region26: #{_lambda_.4} parent=1 // pred_check
      _
    $region27: #{_lambda_.4} parent=1 // pred_check_branch
      %26 = sbr.rel (0) target = $region29
    $region28: #{_lambda_.4} parent=1 // pred_region
      %s28 = ssub.s32 16, 16
      %29 = vsyncadd [#allocation3], %s28
      %s31 = sshll.u32 %s6, 4
      %s32 = int_to_ptr.vmem [resolvable:$true] %s31
      %34 = dma.vmem_to_smem %s32, 16, [#allocation2], [#allocation3]
    $region29: #{_lambda_.4} parent=1 // pred_fallthru
      _
    // Predicated region
    $region30: #{_lambda_.4} parent=1 // pred_check
      _
    $region31: #{_lambda_.4} parent=1 // pred_check_branch
      %36 = sbr.rel (0) target = $region33
    $region32: #{_lambda_.4} parent=1 // pred_region
      %37 = dma.done [#allocation3], 16
    $region33: #{_lambda_.4} parent=1 // pred_fallthru
      _
    %38 = sfence
    %v39 = vld [vmem:[%s0] sm:$0xff]
    %v40 = vld [vmem:[%s1] sm:$0xff]
    %v41 = vld [vmem:[%s1 + $0x8] sm:$0xff]
    %v42 = vld [vmem:[%s2] sm:$0x1]
    %v44 = vlaneseq
    %v45 = vshrl.u32 %v44, 7
    %v46 = vsub.s32 0, %v45
    %v47 = vrot.slane %v42, %v46
    %vm49 = vcmask 130048
    %v51 = vsel %vm49, %v39, 0
    %53 = vmatprep.subr.mxu0 0.0
    %54 = vmatpush1.msra.mxu0 %v40
    %55 = vmatprep.subr.mxu0 0.0
    %56 = vmatpush1.msra.mxu0 %v41
    %57 = vmatprep.subr.mxu0 0.0
    %58 = vmatpush1.msra.mxu0 0.0
    %59 = vmatprep.subr.mxu0 0.0
    %60 = vmatpush1.msra.mxu0 0.0
    %61 = vmatprep.subr.mxu0 0.0
    %62 = vmatpush1.msra.mxu0 0.0
    %63 = vmatprep.subr.mxu0 0.0
    %64 = vmatpush1.msra.mxu0 0.0
    %65 = vmatprep.subr.mxu0 0.0
    %66 = vmatpush1.msra.mxu0 0.0
    %67 = vmatprep.subr.mxu0 0.0
    %68 = vmatpush1.msra.mxu0 0.0
    %69 = vmatprep.subr.mxu0 0.0
    %70 = vmatpush1.msra.mxu0 0.0
    %71 = vmatprep.subr.mxu0 0.0
    %72 = vmatpush1.msra.mxu0 0.0
    %73 = vmatprep.subr.mxu0 0.0
    %74 = vmatpush1.msra.mxu0 0.0
    %75 = vmatprep.subr.mxu0 0.0
    %76 = vmatpush1.msra.mxu0 0.0
    %77 = vmatprep.subr.mxu0 0.0
    %78 = vmatpush1.msra.mxu0 0.0
    %79 = vmatprep.subr.mxu0 0.0
    %80 = vmatpush1.msra.mxu0 0.0
    %81 = vmatprep.subr.mxu0 0.0
    %82 = vmatpush1.msra.mxu0 0.0
    %83 = vmatprep.subr.mxu0 0.0
    %84 = vmatpush1.msra.mxu0 0.0
    %85 = vmatprep.subr.mxu0 0.0
    %86 = vmatpush1.msra.mxu0 0.0
    %87 = vmatprep.subr.mxu0 0.0
    %88 = vmatpush1.msra.mxu0 0.0
    %89 = vmatprep.subr.mxu0 0.0
    %90 = vmatpush1.msra.mxu0 0.0
    %91 = vmatprep.subr.mxu0 0.0
    %92 = vmatpush1.msra.mxu0 0.0
    %93 = vmatprep.subr.mxu0 0.0
    %94 = vmatpush1.msra.mxu0 0.0
    %95 = vmatprep.subr.mxu0 0.0
    %96 = vmatpush1.msra.mxu0 0.0
    %97 = vmatprep.subr.mxu0 0.0
    %98 = vmatpush1.msra.mxu0 0.0
    %99 = vmatprep.subr.mxu0 0.0
    %100 = vmatpush1.msra.mxu0 0.0
    %101 = vmatprep.subr.mxu0 0.0
    %102 = vmatpush1.msra.mxu0 0.0
    %103 = vmatprep.subr.mxu0 0.0
    %104 = vmatpush1.msra.mxu0 0.0
    %105 = vmatprep.subr.mxu0 0.0
    %106 = vmatpush1.msra.mxu0 0.0
    %107 = vmatprep.subr.mxu0 0.0
    %108 = vmatpush1.msra.mxu0 0.0
    %109 = vmatprep.subr.mxu0 0.0
    %110 = vmatpush1.msra.mxu0 0.0
    %111 = vmatprep.subr.mxu0 0.0
    %112 = vmatpush1.msra.mxu0 0.0
    %113 = vmatprep.subr.mxu0 0.0
    %114 = vmatpush1.msra.mxu0 0.0
    %115 = vmatprep.subr.mxu0 0.0
    %116 = vmatpush1.msra.mxu0 0.0
    %117 = vmatprep.mubr.f32.mxu0 0.0
    %118 = vmatmul.mubr.f32.gmra.mrb[0].mxu0 %v51
    %v119 = vpop.f32.mrb[0].mxu0
    %v120 = vadd.f32 %v47, %v119
    %v121 = vpop.f32.mrb[0].mxu0
    %122 = vdwg.mxu0
    %v123 = vld [vmem:[%s3] sm:$0x3]
    %v125 = vsel %vm49, %v123, 0
    %v128 = vsel %vm49, %v120, 0
    %130 = vmatprep.subr.mxu0 0.0
    %131 = vmatpush1.xpose.msra.mxu0 %v128
    %132 = vmatprep.subr.mxu0 0.0
    %133 = vmatpush1.xpose.msra.mxu0 0.0
    %134 = vmatprep.subr.mxu0 0.0
    %135 = vmatpush1.xpose.msra.mxu0 0.0
    %136 = vmatprep.subr.mxu0 0.0
    %137 = vmatpush1.xpose.msra.mxu0 0.0
    %138 = vmatprep.subr.mxu0 0.0
    %139 = vmatpush1.xpose.msra.mxu0 0.0
    %140 = vmatprep.subr.mxu0 0.0
    %141 = vmatpush1.xpose.msra.mxu0 0.0
    %142 = vmatprep.subr.mxu0 0.0
    %143 = vmatpush1.xpose.msra.mxu0 0.0
    %144 = vmatprep.subr.mxu0 0.0
    %145 = vmatpush1.xpose.msra.mxu0 0.0
    %146 = vmatprep.subr.mxu0 0.0
    %147 = vmatpush1.xpose.msra.mxu0 0.0
    %148 = vmatprep.subr.mxu0 0.0
    %149 = vmatpush1.xpose.msra.mxu0 0.0
    %150 = vmatprep.subr.mxu0 0.0
    %151 = vmatpush1.xpose.msra.mxu0 0.0
    %152 = vmatprep.subr.mxu0 0.0
    %153 = vmatpush1.xpose.msra.mxu0 0.0
    %154 = vmatprep.subr.mxu0 0.0
    %155 = vmatpush1.xpose.msra.mxu0 0.0
    %156 = vmatprep.subr.mxu0 0.0
    %157 = vmatpush1.xpose.msra.mxu0 0.0
    %158 = vmatprep.subr.mxu0 0.0
    %159 = vmatpush1.xpose.msra.mxu0 0.0
    %160 = vmatprep.subr.mxu0 0.0
    %161 = vmatpush1.xpose.msra.mxu0 0.0
    %162 = vmatprep.subr.mxu0 0.0
    %163 = vmatpush1.xpose.msra.mxu0 0.0
    %164 = vmatprep.subr.mxu0 0.0
    %165 = vmatpush1.xpose.msra.mxu0 0.0
    %166 = vmatprep.subr.mxu0 0.0
    %167 = vmatpush1.xpose.msra.mxu0 0.0
    %168 = vmatprep.subr.mxu0 0.0
    %169 = vmatpush1.xpose.msra.mxu0 0.0
    %170 = vmatprep.subr.mxu0 0.0
    %171 = vmatpush1.xpose.msra.mxu0 0.0
    %172 = vmatprep.subr.mxu0 0.0
    %173 = vmatpush1.xpose.msra.mxu0 0.0
    %174 = vmatprep.subr.mxu0 0.0
    %175 = vmatpush1.xpose.msra.mxu0 0.0
    %176 = vmatprep.subr.mxu0 0.0
    %177 = vmatpush1.xpose.msra.mxu0 0.0
    %178 = vmatprep.subr.mxu0 0.0
    %179 = vmatpush1.xpose.msra.mxu0 0.0
    %180 = vmatprep.subr.mxu0 0.0
    %181 = vmatpush1.xpose.msra.mxu0 0.0
    %182 = vmatprep.subr.mxu0 0.0
    %183 = vmatpush1.xpose.msra.mxu0 0.0
    %184 = vmatprep.subr.mxu0 0.0
    %185 = vmatpush1.xpose.msra.mxu0 0.0
    %186 = vmatprep.subr.mxu0 0.0
    %187 = vmatpush1.xpose.msra.mxu0 0.0
    %188 = vmatprep.subr.mxu0 0.0
    %189 = vmatpush1.xpose.msra.mxu0 0.0
    %190 = vmatprep.subr.mxu0 0.0
    %191 = vmatpush1.xpose.msra.mxu0 0.0
    %192 = vmatprep.subr.mxu0 0.0
    %193 = vmatpush1.xpose.msra.mxu0 0.0
    %194 = vmatprep.mubr.f32.mxu0 0.0
    %195 = vmatmul.mubr.f32.gmra.mrb[0].mxu0 %v125
    %v196 = vpop.f32.mrb[0].mxu0
    %v197 = vadd.f32 0.0, %v196
    %v198 = vpop.f32.mrb[0].mxu0
    %199 = vdwg.mxu0
    %v200 = vld [vmem:[%s4] sm:$0xff]
    %v201 = vld [vmem:[%s4 + $0x8] sm:$0xff]
    %202 = vmatprep.subr.mxu0 0.0
    %203 = vmatpush1.msra.mxu0 %v200
    %204 = vmatprep.subr.mxu0 0.0
    %205 = vmatpush1.msra.mxu0 %v201
    %206 = vmatprep.subr.mxu0 0.0
    %207 = vmatpush1.msra.mxu0 0.0
    %208 = vmatprep.subr.mxu0 0.0
    %209 = vmatpush1.msra.mxu0 0.0
    %210 = vmatprep.subr.mxu0 0.0
    %211 = vmatpush1.msra.mxu0 0.0
    %212 = vmatprep.subr.mxu0 0.0
    %213 = vmatpush1.msra.mxu0 0.0
    %214 = vmatprep.subr.mxu0 0.0
    %215 = vmatpush1.msra.mxu0 0.0
    %216 = vmatprep.subr.mxu0 0.0
    %217 = vmatpush1.msra.mxu0 0.0
    %218 = vmatprep.subr.mxu0 0.0
    %219 = vmatpush1.msra.mxu0 0.0
    %220 = vmatprep.subr.mxu0 0.0
    %221 = vmatpush1.msra.mxu0 0.0
    %222 = vmatprep.subr.mxu0 0.0
    %223 = vmatpush1.msra.mxu0 0.0
    %224 = vmatprep.subr.mxu0 0.0
    %225 = vmatpush1.msra.mxu0 0.0
    %226 = vmatprep.subr.mxu0 0.0
    %227 = vmatpush1.msra.mxu0 0.0
    %228 = vmatprep.subr.mxu0 0.0
    %229 = vmatpush1.msra.mxu0 0.0
    %230 = vmatprep.subr.mxu0 0.0
    %231 = vmatpush1.msra.mxu0 0.0
    %232 = vmatprep.subr.mxu0 0.0
    %233 = vmatpush1.msra.mxu0 0.0
    %234 = vmatprep.subr.mxu0 0.0
    %235 = vmatpush1.msra.mxu0 0.0
    %236 = vmatprep.subr.mxu0 0.0
    %237 = vmatpush1.msra.mxu0 0.0
    %238 = vmatprep.subr.mxu0 0.0
    %239 = vmatpush1.msra.mxu0 0.0
    %240 = vmatprep.subr.mxu0 0.0
    %241 = vmatpush1.msra.mxu0 0.0
    %242 = vmatprep.subr.mxu0 0.0
    %243 = vmatpush1.msra.mxu0 0.0
    %244 = vmatprep.subr.mxu0 0.0
    %245 = vmatpush1.msra.mxu0 0.0
    %246 = vmatprep.subr.mxu0 0.0
    %247 = vmatpush1.msra.mxu0 0.0
    %248 = vmatprep.subr.mxu0 0.0
    %249 = vmatpush1.msra.mxu0 0.0
    %250 = vmatprep.subr.mxu0 0.0
    %251 = vmatpush1.msra.mxu0 0.0
    %252 = vmatprep.subr.mxu0 0.0
    %253 = vmatpush1.msra.mxu0 0.0
    %254 = vmatprep.subr.mxu0 0.0
    %255 = vmatpush1.msra.mxu0 0.0
    %256 = vmatprep.subr.mxu0 0.0
    %257 = vmatpush1.msra.mxu0 0.0
    %258 = vmatprep.subr.mxu0 0.0
    %259 = vmatpush1.msra.mxu0 0.0
    %260 = vmatprep.subr.mxu0 0.0
    %261 = vmatpush1.msra.mxu0 0.0
    %262 = vmatprep.subr.mxu0 0.0
    %263 = vmatpush1.msra.mxu0 0.0
    %264 = vmatprep.subr.mxu0 0.0
    %265 = vmatpush1.msra.mxu0 0.0
    %266 = vmatprep.mubr.f32.mxu0 0.0
    %267 = vmatmul.mubr.f32.gmra.mrb[0].mxu0 %v128
    %v268 = vpop.f32.mrb[0].mxu0
    %v269 = vadd.f32 0.0, %v268
    %v270 = vpop.f32.mrb[0].mxu0
    %271 = vdwg.mxu0
    %v272 = vld [vmem:[%s5] sm:$0xff]
    %v273 = vlaneseq
    %v274 = vshrl.u32 %v273, 7
    %v275 = vsub.s32 0, %v274
    %v276 = vrot.slane %v197, %v275
    %278 = vset.pattern.permute.xlu0 0
    %279 = vperm.xlu0 %278, %v269
    %v280 = vpop.permute.xlu0 %279
    %v282 = vadd.f32 %v276, %v280
    %s283 = sld [smem:[#allocation2]]
    %v284 = vstv %s283
    %v285 = vadd.f32 %v282, %v284
    %vm286 = vcmp.ge.f32.partialorder %v285, 0.0
    %v287 = vmul.f32 %v285, 0.01
    %v288 = vsel %vm286, %v285, %v287
    %vm289 = vcmp.gt.f32.partialorder %v272, 0.0
    %v290 = vsel %vm289, %v288, -1e+30
    %vm291 = vcmask 64512
    %v292 = vsel %vm291, %v290, -inf
    %293 = vmax.xlane.f32.xlu0 %v292
    %v294 = vpop.xlane.xlu0 %293
    %v295 = vsub.f32 %v290, %v294
    %v296 = vmul.f32 %v295, 1.442695
    %v297 = vpow.pop %v296
    %v298 = vmul.f32 %v297, %v272
    %v299 = vsel %vm291, %v298, 0.0
    %300 = vadd.xlane.f32.xlu0 %v299
    %v301 = vpop.xlane.xlu0 %300
    %v302 = vmax.f32 %v301, 1e-30
    %v303 = vrcp.pop %v302
    %v304 = vmul.f32 %v298, %v303
    %v306 = vsel %vm291, %v304, 0
    %308 = vmatprep.subr.mxu0 0.0
    %309 = vmatpush1.msra.mxu0 %v120
    %310 = vmatprep.subr.mxu0 0.0
    %311 = vmatpush1.msra.mxu0 0.0
    %312 = vmatprep.subr.mxu0 0.0
    %313 = vmatpush1.msra.mxu0 0.0
    %314 = vmatprep.subr.mxu0 0.0
    %315 = vmatpush1.msra.mxu0 0.0
    %316 = vmatprep.subr.mxu0 0.0
    %317 = vmatpush1.msra.mxu0 0.0
    %318 = vmatprep.subr.mxu0 0.0
    %319 = vmatpush1.msra.mxu0 0.0
    %320 = vmatprep.subr.mxu0 0.0
    %321 = vmatpush1.msra.mxu0 0.0
    %322 = vmatprep.subr.mxu0 0.0
    %323 = vmatpush1.msra.mxu0 0.0
    %324 = vmatprep.subr.mxu0 0.0
    %325 = vmatpush1.msra.mxu0 0.0
    %326 = vmatprep.subr.mxu0 0.0
    %327 = vmatpush1.msra.mxu0 0.0
    %328 = vmatprep.subr.mxu0 0.0
    %329 = vmatpush1.msra.mxu0 0.0
    %330 = vmatprep.subr.mxu0 0.0
    %331 = vmatpush1.msra.mxu0 0.0
    %332 = vmatprep.subr.mxu0 0.0
    %333 = vmatpush1.msra.mxu0 0.0
    %334 = vmatprep.subr.mxu0 0.0
    %335 = vmatpush1.msra.mxu0 0.0
    %336 = vmatprep.subr.mxu0 0.0
    %337 = vmatpush1.msra.mxu0 0.0
    %338 = vmatprep.subr.mxu0 0.0
    %339 = vmatpush1.msra.mxu0 0.0
    %340 = vmatprep.subr.mxu0 0.0
    %341 = vmatpush1.msra.mxu0 0.0
    %342 = vmatprep.subr.mxu0 0.0
    %343 = vmatpush1.msra.mxu0 0.0
    %344 = vmatprep.subr.mxu0 0.0
    %345 = vmatpush1.msra.mxu0 0.0
    %346 = vmatprep.subr.mxu0 0.0
    %347 = vmatpush1.msra.mxu0 0.0
    %348 = vmatprep.subr.mxu0 0.0
    %349 = vmatpush1.msra.mxu0 0.0
    %350 = vmatprep.subr.mxu0 0.0
    %351 = vmatpush1.msra.mxu0 0.0
    %352 = vmatprep.subr.mxu0 0.0
    %353 = vmatpush1.msra.mxu0 0.0
    %354 = vmatprep.subr.mxu0 0.0
    %355 = vmatpush1.msra.mxu0 0.0
    %356 = vmatprep.subr.mxu0 0.0
    %357 = vmatpush1.msra.mxu0 0.0
    %358 = vmatprep.subr.mxu0 0.0
    %359 = vmatpush1.msra.mxu0 0.0
    %360 = vmatprep.subr.mxu0 0.0
    %361 = vmatpush1.msra.mxu0 0.0
    %362 = vmatprep.subr.mxu0 0.0
    %363 = vmatpush1.msra.mxu0 0.0
    %364 = vmatprep.subr.mxu0 0.0
    %365 = vmatpush1.msra.mxu0 0.0
    %366 = vmatprep.subr.mxu0 0.0
    %367 = vmatpush1.msra.mxu0 0.0
    %368 = vmatprep.subr.mxu0 0.0
    %369 = vmatpush1.msra.mxu0 0.0
    %370 = vmatprep.subr.mxu0 0.0
    %371 = vmatpush1.msra.mxu0 0.0
    %372 = vmatprep.mubr.f32.mxu0 0.0
    %373 = vmatmul.mubr.f32.gmra.mrb[0].mxu0 %v306
    %v374 = vpop.f32.mrb[0].mxu0
    %v375 = vadd.f32 0.0, %v374
    %v376 = vpop.f32.mrb[0].mxu0
    %377 = vdwg.mxu0
    %378 = vst.msk [vmem:[%s7] sm:$0xff] %vm291, %v375
    %v379 = vlaneseq
    %v380 = vshrl.u32 %v379, 7
    %v381 = vsub.s32 1, %v380
    %v382 = vrot.slane %v197, %v381
    %383 = vset.pattern.permute.xlu0 1
    %384 = vperm.xlu0 %383, %v269
    %v385 = vpop.permute.xlu0 %384
    %v387 = vadd.f32 %v382, %v385
    %s388 = sld [smem:[#allocation2 + $0x1]]
    %v389 = vstv %s388
    %v390 = vadd.f32 %v387, %v389
    %vm391 = vcmp.ge.f32.partialorder %v390, 0.0
    %v392 = vmul.f32 %v390, 0.01
    %v393 = vsel %vm391, %v390, %v392
    %v394 = vsel %vm289, %v393, -1e+30
    %v395 = vsel %vm291, %v394, -inf
    %396 = vmax.xlane.f32.xlu0 %v395
    %v397 = vpop.xlane.xlu0 %396
    %v398 = vsub.f32 %v394, %v397
    %v399 = vmul.f32 %v398, 1.442695
    %v400 = vpow.pop %v399
    %v401 = vmul.f32 %v400, %v272
    %v402 = vsel %vm291, %v401, 0.0
    %403 = vadd.xlane.f32.xlu0 %v402
    %v404 = vpop.xlane.xlu0 %403
    %v405 = vmax.f32 %v404, 1e-30
    %v406 = vrcp.pop %v405
    %v407 = vmul.f32 %v401, %v406
    %408 = vrot.lane.b32.xlu0 %v120, 120
    %v409 = vpop.permute.xlu0 %408
    %v412 = vsel %vm291, %v407, 0
    %414 = vmatprep.subr.mxu0 0.0
    %415 = vmatpush1.msra.mxu0 %v409
    %416 = vmatprep.subr.mxu0 0.0
    %417 = vmatpush1.msra.mxu0 0.0
    %418 = vmatprep.subr.mxu0 0.0
    %419 = vmatpush1.msra.mxu0 0.0
    %420 = vmatprep.subr.mxu0 0.0
    %421 = vmatpush1.msra.mxu0 0.0
    %422 = vmatprep.subr.mxu0 0.0
    %423 = vmatpush1.msra.mxu0 0.0
    %424 = vmatprep.subr.mxu0 0.0
    %425 = vmatpush1.msra.mxu0 0.0
    %426 = vmatprep.subr.mxu0 0.0
    %427 = vmatpush1.msra.mxu0 0.0
    %428 = vmatprep.subr.mxu0 0.0
    %429 = vmatpush1.msra.mxu0 0.0
    %430 = vmatprep.subr.mxu0 0.0
    %431 = vmatpush1.msra.mxu0 0.0
    %432 = vmatprep.subr.mxu0 0.0
    %433 = vmatpush1.msra.mxu0 0.0
    %434 = vmatprep.subr.mxu0 0.0
    %435 = vmatpush1.msra.mxu0 0.0
    %436 = vmatprep.subr.mxu0 0.0
    %437 = vmatpush1.msra.mxu0 0.0
    %438 = vmatprep.subr.mxu0 0.0
    %439 = vmatpush1.msra.mxu0 0.0
    %440 = vmatprep.subr.mxu0 0.0
    %441 = vmatpush1.msra.mxu0 0.0
    %442 = vmatprep.subr.mxu0 0.0
    %443 = vmatpush1.msra.mxu0 0.0
    %444 = vmatprep.subr.mxu0 0.0
    %445 = vmatpush1.msra.mxu0 0.0
    %446 = vmatprep.subr.mxu0 0.0
    %447 = vmatpush1.msra.mxu0 0.0
    %448 = vmatprep.subr.mxu0 0.0
    %449 = vmatpush1.msra.mxu0 0.0
    %450 = vmatprep.subr.mxu0 0.0
    %451 = vmatpush1.msra.mxu0 0.0
    %452 = vmatprep.subr.mxu0 0.0
    %453 = vmatpush1.msra.mxu0 0.0
    %454 = vmatprep.subr.mxu0 0.0
    %455 = vmatpush1.msra.mxu0 0.0
    %456 = vmatprep.subr.mxu0 0.0
    %457 = vmatpush1.msra.mxu0 0.0
    %458 = vmatprep.subr.mxu0 0.0
    %459 = vmatpush1.msra.mxu0 0.0
    %460 = vmatprep.subr.mxu0 0.0
    %461 = vmatpush1.msra.mxu0 0.0
    %462 = vmatprep.subr.mxu0 0.0
    %463 = vmatpush1.msra.mxu0 0.0
    %464 = vmatprep.subr.mxu0 0.0
    %465 = vmatpush1.msra.mxu0 0.0
    %466 = vmatprep.subr.mxu0 0.0
    %467 = vmatpush1.msra.mxu0 0.0
    %468 = vmatprep.subr.mxu0 0.0
    %469 = vmatpush1.msra.mxu0 0.0
    %470 = vmatprep.subr.mxu0 0.0
    %471 = vmatpush1.msra.mxu0 0.0
    %472 = vmatprep.subr.mxu0 0.0
    %473 = vmatpush1.msra.mxu0 0.0
    %474 = vmatprep.subr.mxu0 0.0
    %475 = vmatpush1.msra.mxu0 0.0
    %476 = vmatprep.subr.mxu0 0.0
    %477 = vmatpush1.msra.mxu0 0.0
    %478 = vmatprep.mubr.f32.mxu0 0.0
    %479 = vmatmul.mubr.f32.gmra.mrb[0].mxu0 %v412
    %v480 = vpop.f32.mrb[0].mxu0
    %v481 = vadd.f32 0.0, %v480
    %v482 = vpop.f32.mrb[0].mxu0
    %483 = vdwg.mxu0
    %485 = vrot.lane.b32.xlu0 %v481, 8
    %v486 = vpop.permute.xlu0 %485
    %vm488 = vcmask 130112
    %489 = vst.msk [vmem:[%s7] sm:$0xff] %vm488, %v486
    // Predicated region
    $region34: #{_lambda_.4} parent=1 // pred_check
      _
    $region35: #{_lambda_.4} parent=1 // pred_check_branch
      %491 = sbr.rel (0) target = $region37
    $region36: #{_lambda_.4} parent=1 // pred_region
      _
    $region37: #{_lambda_.4} parent=1 // pred_fallthru
      _
    // Predicated region
    $region38: #{_lambda_.4} parent=1 // pred_check
      _
    $region39: #{_lambda_.4} parent=1 // pred_check_branch
      %493 = sbr.rel (0) target = $region41
    $region40: #{_lambda_.4} parent=1 // pred_region
      _
    $region41: #{_lambda_.4} parent=1 // pred_fallthru
      _
    %494 = vsyncpa [#allocation3], 1

// kernel: _lambda_.3
$region0: #{_lambda_.3}
  #allocation0 [shape = 'u32[]', space=smem, size = 0x4, offset = 0x4, fixed_abs, tag = 'smem constant byte address 0x4 - core index']
  #allocation1 [shape = 'u32[144,128]{1,0:T(1,128)}', space=vmem, size = 0x12000, scoped, tag = 'internal scratch']
  %s0 = inlined_call_operand.hbm [shape: f32[8,16], index: 0, kind: input, shape index: {}]
  %s1 = inlined_call_operand.vmem [shape: f32[16,16], index: 1, kind: input, shape index: {}]
  %s2 = inlined_call_operand.vmem [shape: f32[1,16], index: 2, kind: input, shape index: {}]
  %s3 = inlined_call_operand.vmem [shape: f32[2,16], index: 3, kind: input, shape index: {}]
  %s4 = inlined_call_operand.vmem [shape: f32[16,2], index: 4, kind: input, shape index: {}]
  %s5 = inlined_call_operand.hbm [shape: f32[8,8], index: 5, kind: input, shape index: {}]
  %s6 = inlined_call_operand.vmem [shape: f32[2], index: 6, kind: input, shape index: {}]
  %s7 = inlined_call_operand.vmem [shape: f32[8,16], index: 7, kind: output, shape index: {}]
  %s8 = sld [smem:[#allocation0]]
  $region50: #{_lambda_.3} parent=0
    _
  %s10 = ssub.s32 1, %s8
  %s11 = scalar_select 0, %s10, %s8
  $region1: #{_lambda_.3} parent=0
    #allocation2 [shape = 'u8[4096]{0}', space=vmem, size = 0x1000, scoped, tag = 'input window, operand 0, single buffered']
    #allocation3 [shape = 's32[1]{0}', space=sflag, size = 0x4, scoped, tag = 'scoped memory for _lambda_.3']
    #allocation4 [shape = 's32[1]{0}', space=sflag, size = 0x4, scoped, tag = 'scoped memory for _lambda_.3']
    #allocation5 [shape = 'u8[4096]{0}', space=vmem, size = 0x1000, scoped, tag = 'input window, operand 5, single buffered']
    #allocation6 [shape = 's32[1]{0}', space=sflag, size = 0x4, scoped, tag = 'scoped memory for _lambda_.3']
    #allocation7 [shape = 'u8[512]{0}', space=smem, size = 0x200, scoped, tag = 'input window, operand 6, single buffered']
    %12 = vsyncpa [#allocation3], 0
    %13 = vsyncpa [#allocation6], 0
    %14 = vsyncpa [#allocation4], 0
    // Predicated region
    $region2: #{_lambda_.3} parent=1 // pred_check
      _
    $region3: #{_lambda_.3} parent=1 // pred_check_branch
      %16 = sbr.rel (0) target = $region5
    $region4: #{_lambda_.3} parent=1 // pred_region
      %s18 = ssub.s32 128, 128
      %19 = vsyncadd [#allocation3], %s18
      %s21 = sshll.u32 [#allocation2], 4
      %s22 = int_to_ptr.vmem [resolvable:$true] %s21
      %24 = dma.hbm_to_vmem [thread:$0]  %s0, 128, %s22, [#allocation3]
    $region5: #{_lambda_.3} parent=1 // pred_fallthru
      _
    // Predicated region
    $region6: #{_lambda_.3} parent=1 // pred_check
      _
    $region7: #{_lambda_.3} parent=1 // pred_check_branch
      %26 = sbr.rel (0) target = $region9
    $region8: #{_lambda_.3} parent=1 // pred_region
      _
    $region9: #{_lambda_.3} parent=1 // pred_fallthru
      _
    // Predicated region
    $region10: #{_lambda_.3} parent=1 // pred_check
      _
    $region11: #{_lambda_.3} parent=1 // pred_check_branch
      %28 = sbr.rel (0) target = $region13
    $region12: #{_lambda_.3} parent=1 // pred_region
      _
    $region13: #{_lambda_.3} parent=1 // pred_fallthru
      _
    // Predicated region
    $region14: #{_lambda_.3} parent=1 // pred_check
      _
    $region15: #{_lambda_.3} parent=1 // pred_check_branch
      %30 = sbr.rel (0) target = $region17
    $region16: #{_lambda_.3} parent=1 // pred_region
      _
    $region17: #{_lambda_.3} parent=1 // pred_fallthru
      _
    // Predicated region
    $region18: #{_lambda_.3} parent=1 // pred_check
      _
    $region19: #{_lambda_.3} parent=1 // pred_check_branch
      %32 = sbr.rel (0) target = $region21
    $region20: #{_lambda_.3} parent=1 // pred_region
      _
    $region21: #{_lambda_.3} parent=1 // pred_fallthru
      _
    // Predicated region
    $region22: #{_lambda_.3} parent=1 // pred_check
      _
    $region23: #{_lambda_.3} parent=1 // pred_check_branch
      %34 = sbr.rel (0) target = $region25
    $region24: #{_lambda_.3} parent=1 // pred_region
      %s36 = ssub.s32 128, 128
      %37 = vsyncadd [#allocation6], %s36
      %s39 = sshll.u32 [#allocation5], 4
      %s40 = int_to_ptr.vmem [resolvable:$true] %s39
      %42 = dma.hbm_to_vmem [thread:$0]  %s5, 128, %s40, [#allocation6]
    $region25: #{_lambda_.3} parent=1 // pred_fallthru
      _
    // Predicated region
    $region26: #{_lambda_.3} parent=1 // pred_check
      _
    $region27: #{_lambda_.3} parent=1 // pred_check_branch
      %44 = sbr.rel (0) target = $region29
    $region28: #{_lambda_.3} parent=1 // pred_region
      %s46 = ssub.s32 16, 16
      %47 = vsyncadd [#allocation4], %s46
      %s49 = sshll.u32 %s6, 4
      %s50 = int_to_ptr.vmem [resolvable:$true] %s49
      %52 = dma.vmem_to_smem %s50, 16, [#allocation7], [#allocation4]
    $region29: #{_lambda_.3} parent=1 // pred_fallthru
      _
    // Predicated region
    $region30: #{_lambda_.3} parent=1 // pred_check
      _
    $region31: #{_lambda_.3} parent=1 // pred_check_branch
      %54 = sbr.rel (0) target = $region33
    $region32: #{_lambda_.3} parent=1 // pred_region
      %55 = dma.done [#allocation3], 128
    $region33: #{_lambda_.3} parent=1 // pred_fallthru
      _
    // Predicated region
    $region34: #{_lambda_.3} parent=1 // pred_check
      _
    $region35: #{_lambda_.3} parent=1 // pred_check_branch
      %57 = sbr.rel (0) target = $region37
    $region36: #{_lambda_.3} parent=1 // pred_region
      %58 = dma.done [#allocation6], 128
    $region37: #{_lambda_.3} parent=1 // pred_fallthru
      _
    // Predicated region
    $region38: #{_lambda_.3} parent=1 // pred_check
      _
    $region39: #{_lambda_.3} parent=1 // pred_check_branch
      %60 = sbr.rel (0) target = $region41
    $region40: #{_lambda_.3} parent=1 // pred_region
      %61 = dma.done [#allocation4], 16
    $region41: #{_lambda_.3} parent=1 // pred_fallthru
      _
    %62 = sfence
    %v63 = vld [vmem:[#allocation2] sm:$0xff]
    %v64 = vld [vmem:[%s1] sm:$0xff]
    %v65 = vld [vmem:[%s1 + $0x8] sm:$0xff]
    %v66 = vld [vmem:[%s2] sm:$0x1]
    %v68 = vlaneseq
    %v69 = vshrl.u32 %v68, 7
    %v70 = vsub.s32 0, %v69
    %v71 = vrot.slane %v66, %v70
    %vm73 = vcmask 130048
    %v75 = vsel %vm73, %v63, 0
    %77 = vmatprep.subr.mxu0 0.0
    %78 = vmatpush1.msra.mxu0 %v64
    %79 = vmatprep.subr.mxu0 0.0
    %80 = vmatpush1.msra.mxu0 %v65
    %81 = vmatprep.subr.mxu0 0.0
    %82 = vmatpush1.msra.mxu0 0.0
    %83 = vmatprep.subr.mxu0 0.0
    %84 = vmatpush1.msra.mxu0 0.0
    %85 = vmatprep.subr.mxu0 0.0
    %86 = vmatpush1.msra.mxu0 0.0
    %87 = vmatprep.subr.mxu0 0.0
    %88 = vmatpush1.msra.mxu0 0.0
    %89 = vmatprep.subr.mxu0 0.0
    %90 = vmatpush1.msra.mxu0 0.0
    %91 = vmatprep.subr.mxu0 0.0
    %92 = vmatpush1.msra.mxu0 0.0
    %93 = vmatprep.subr.mxu0 0.0
    %94 = vmatpush1.msra.mxu0 0.0
    %95 = vmatprep.subr.mxu0 0.0
    %96 = vmatpush1.msra.mxu0 0.0
    %97 = vmatprep.subr.mxu0 0.0
    %98 = vmatpush1.msra.mxu0 0.0
    %99 = vmatprep.subr.mxu0 0.0
    %100 = vmatpush1.msra.mxu0 0.0
    %101 = vmatprep.subr.mxu0 0.0
    %102 = vmatpush1.msra.mxu0 0.0
    %103 = vmatprep.subr.mxu0 0.0
    %104 = vmatpush1.msra.mxu0 0.0
    %105 = vmatprep.subr.mxu0 0.0
    %106 = vmatpush1.msra.mxu0 0.0
    %107 = vmatprep.subr.mxu0 0.0
    %108 = vmatpush1.msra.mxu0 0.0
    %109 = vmatprep.subr.mxu0 0.0
    %110 = vmatpush1.msra.mxu0 0.0
    %111 = vmatprep.subr.mxu0 0.0
    %112 = vmatpush1.msra.mxu0 0.0
    %113 = vmatprep.subr.mxu0 0.0
    %114 = vmatpush1.msra.mxu0 0.0
    %115 = vmatprep.subr.mxu0 0.0
    %116 = vmatpush1.msra.mxu0 0.0
    %117 = vmatprep.subr.mxu0 0.0
    %118 = vmatpush1.msra.mxu0 0.0
    %119 = vmatprep.subr.mxu0 0.0
    %120 = vmatpush1.msra.mxu0 0.0
    %121 = vmatprep.subr.mxu0 0.0
    %122 = vmatpush1.msra.mxu0 0.0
    %123 = vmatprep.subr.mxu0 0.0
    %124 = vmatpush1.msra.mxu0 0.0
    %125 = vmatprep.subr.mxu0 0.0
    %126 = vmatpush1.msra.mxu0 0.0
    %127 = vmatprep.subr.mxu0 0.0
    %128 = vmatpush1.msra.mxu0 0.0
    %129 = vmatprep.subr.mxu0 0.0
    %130 = vmatpush1.msra.mxu0 0.0
    %131 = vmatprep.subr.mxu0 0.0
    %132 = vmatpush1.msra.mxu0 0.0
    %133 = vmatprep.subr.mxu0 0.0
    %134 = vmatpush1.msra.mxu0 0.0
    %135 = vmatprep.subr.mxu0 0.0
    %136 = vmatpush1.msra.mxu0 0.0
    %137 = vmatprep.subr.mxu0 0.0
    %138 = vmatpush1.msra.mxu0 0.0
    %139 = vmatprep.subr.mxu0 0.0
    %140 = vmatpush1.msra.mxu0 0.0
    %141 = vmatprep.mubr.f32.mxu0 0.0
    %142 = vmatmul.mubr.f32.gmra.mrb[0].mxu0 %v75
    %v143 = vpop.f32.mrb[0].mxu0
    %v144 = vadd.f32 %v71, %v143
    %v145 = vpop.f32.mrb[0].mxu0
    %146 = vdwg.mxu0
    %v147 = vld [vmem:[%s3] sm:$0x3]
    %v149 = vsel %vm73, %v147, 0
    %v152 = vsel %vm73, %v144, 0
    %154 = vmatprep.subr.mxu0 0.0
    %155 = vmatpush1.xpose.msra.mxu0 %v152
    %156 = vmatprep.subr.mxu0 0.0
    %157 = vmatpush1.xpose.msra.mxu0 0.0
    %158 = vmatprep.subr.mxu0 0.0
    %159 = vmatpush1.xpose.msra.mxu0 0.0
    %160 = vmatprep.subr.mxu0 0.0
    %161 = vmatpush1.xpose.msra.mxu0 0.0
    %162 = vmatprep.subr.mxu0 0.0
    %163 = vmatpush1.xpose.msra.mxu0 0.0
    %164 = vmatprep.subr.mxu0 0.0
    %165 = vmatpush1.xpose.msra.mxu0 0.0
    %166 = vmatprep.subr.mxu0 0.0
    %167 = vmatpush1.xpose.msra.mxu0 0.0
    %168 = vmatprep.subr.mxu0 0.0
    %169 = vmatpush1.xpose.msra.mxu0 0.0
    %170 = vmatprep.subr.mxu0 0.0
    %171 = vmatpush1.xpose.msra.mxu0 0.0
    %172 = vmatprep.subr.mxu0 0.0
    %173 = vmatpush1.xpose.msra.mxu0 0.0
    %174 = vmatprep.subr.mxu0 0.0
    %175 = vmatpush1.xpose.msra.mxu0 0.0
    %176 = vmatprep.subr.mxu0 0.0
    %177 = vmatpush1.xpose.msra.mxu0 0.0
    %178 = vmatprep.subr.mxu0 0.0
    %179 = vmatpush1.xpose.msra.mxu0 0.0
    %180 = vmatprep.subr.mxu0 0.0
    %181 = vmatpush1.xpose.msra.mxu0 0.0
    %182 = vmatprep.subr.mxu0 0.0
    %183 = vmatpush1.xpose.msra.mxu0 0.0
    %184 = vmatprep.subr.mxu0 0.0
    %185 = vmatpush1.xpose.msra.mxu0 0.0
    %186 = vmatprep.subr.mxu0 0.0
    %187 = vmatpush1.xpose.msra.mxu0 0.0
    %188 = vmatprep.subr.mxu0 0.0
    %189 = vmatpush1.xpose.msra.mxu0 0.0
    %190 = vmatprep.subr.mxu0 0.0
    %191 = vmatpush1.xpose.msra.mxu0 0.0
    %192 = vmatprep.subr.mxu0 0.0
    %193 = vmatpush1.xpose.msra.mxu0 0.0
    %194 = vmatprep.subr.mxu0 0.0
    %195 = vmatpush1.xpose.msra.mxu0 0.0
    %196 = vmatprep.subr.mxu0 0.0
    %197 = vmatpush1.xpose.msra.mxu0 0.0
    %198 = vmatprep.subr.mxu0 0.0
    %199 = vmatpush1.xpose.msra.mxu0 0.0
    %200 = vmatprep.subr.mxu0 0.0
    %201 = vmatpush1.xpose.msra.mxu0 0.0
    %202 = vmatprep.subr.mxu0 0.0
    %203 = vmatpush1.xpose.msra.mxu0 0.0
    %204 = vmatprep.subr.mxu0 0.0
    %205 = vmatpush1.xpose.msra.mxu0 0.0
    %206 = vmatprep.subr.mxu0 0.0
    %207 = vmatpush1.xpose.msra.mxu0 0.0
    %208 = vmatprep.subr.mxu0 0.0
    %209 = vmatpush1.xpose.msra.mxu0 0.0
    %210 = vmatprep.subr.mxu0 0.0
    %211 = vmatpush1.xpose.msra.mxu0 0.0
    %212 = vmatprep.subr.mxu0 0.0
    %213 = vmatpush1.xpose.msra.mxu0 0.0
    %214 = vmatprep.subr.mxu0 0.0
    %215 = vmatpush1.xpose.msra.mxu0 0.0
    %216 = vmatprep.subr.mxu0 0.0
    %217 = vmatpush1.xpose.msra.mxu0 0.0
    %218 = vmatprep.mubr.f32.mxu0 0.0
    %219 = vmatmul.mubr.f32.gmra.mrb[0].mxu0 %v149
    %v220 = vpop.f32.mrb[0].mxu0
    %v221 = vadd.f32 0.0, %v220
    %v222 = vpop.f32.mrb[0].mxu0
    %223 = vdwg.mxu0
    %v224 = vld [vmem:[%s4] sm:$0xff]
    %v225 = vld [vmem:[%s4 + $0x8] sm:$0xff]
    %226 = vmatprep.subr.mxu0 0.0
    %227 = vmatpush1.msra.mxu0 %v224
    %228 = vmatprep.subr.mxu0 0.0
    %229 = vmatpush1.msra.mxu0 %v225
    %230 = vmatprep.subr.mxu0 0.0
    %231 = vmatpush1.msra.mxu0 0.0
    %232 = vmatprep.subr.mxu0 0.0
    %233 = vmatpush1.msra.mxu0 0.0
    %234 = vmatprep.subr.mxu0 0.0
    %235 = vmatpush1.msra.mxu0 0.0
    %236 = vmatprep.subr.mxu0 0.0
    %237 = vmatpush1.msra.mxu0 0.0
    %238 = vmatprep.subr.mxu0 0.0
    %239 = vmatpush1.msra.mxu0 0.0
    %240 = vmatprep.subr.mxu0 0.0
    %241 = vmatpush1.msra.mxu0 0.0
    %242 = vmatprep.subr.mxu0 0.0
    %243 = vmatpush1.msra.mxu0 0.0
    %244 = vmatprep.subr.mxu0 0.0
    %245 = vmatpush1.msra.mxu0 0.0
    %246 = vmatprep.subr.mxu0 0.0
    %247 = vmatpush1.msra.mxu0 0.0
    %248 = vmatprep.subr.mxu0 0.0
    %249 = vmatpush1.msra.mxu0 0.0
    %250 = vmatprep.subr.mxu0 0.0
    %251 = vmatpush1.msra.mxu0 0.0
    %252 = vmatprep.subr.mxu0 0.0
    %253 = vmatpush1.msra.mxu0 0.0
    %254 = vmatprep.subr.mxu0 0.0
    %255 = vmatpush1.msra.mxu0 0.0
    %256 = vmatprep.subr.mxu0 0.0
    %257 = vmatpush1.msra.mxu0 0.0
    %258 = vmatprep.subr.mxu0 0.0
    %259 = vmatpush1.msra.mxu0 0.0
    %260 = vmatprep.subr.mxu0 0.0
    %261 = vmatpush1.msra.mxu0 0.0
    %262 = vmatprep.subr.mxu0 0.0
    %263 = vmatpush1.msra.mxu0 0.0
    %264 = vmatprep.subr.mxu0 0.0
    %265 = vmatpush1.msra.mxu0 0.0
    %266 = vmatprep.subr.mxu0 0.0
    %267 = vmatpush1.msra.mxu0 0.0
    %268 = vmatprep.subr.mxu0 0.0
    %269 = vmatpush1.msra.mxu0 0.0
    %270 = vmatprep.subr.mxu0 0.0
    %271 = vmatpush1.msra.mxu0 0.0
    %272 = vmatprep.subr.mxu0 0.0
    %273 = vmatpush1.msra.mxu0 0.0
    %274 = vmatprep.subr.mxu0 0.0
    %275 = vmatpush1.msra.mxu0 0.0
    %276 = vmatprep.subr.mxu0 0.0
    %277 = vmatpush1.msra.mxu0 0.0
    %278 = vmatprep.subr.mxu0 0.0
    %279 = vmatpush1.msra.mxu0 0.0
    %280 = vmatprep.subr.mxu0 0.0
    %281 = vmatpush1.msra.mxu0 0.0
    %282 = vmatprep.subr.mxu0 0.0
    %283 = vmatpush1.msra.mxu0 0.0
    %284 = vmatprep.subr.mxu0 0.0
    %285 = vmatpush1.msra.mxu0 0.0
    %286 = vmatprep.subr.mxu0 0.0
    %287 = vmatpush1.msra.mxu0 0.0
    %288 = vmatprep.subr.mxu0 0.0
    %289 = vmatpush1.msra.mxu0 0.0
    %290 = vmatprep.mubr.f32.mxu0 0.0
    %291 = vmatmul.mubr.f32.gmra.mrb[0].mxu0 %v152
    %v292 = vpop.f32.mrb[0].mxu0
    %v293 = vadd.f32 0.0, %v292
    %v294 = vpop.f32.mrb[0].mxu0
    %295 = vdwg.mxu0
    %v296 = vld [vmem:[#allocation5] sm:$0xff]
    %v297 = vlaneseq
    %v298 = vshrl.u32 %v297, 7
    %v299 = vsub.s32 0, %v298
    %v300 = vrot.slane %v221, %v299
    %302 = vset.pattern.permute.xlu0 0
    %303 = vperm.xlu0 %302, %v293
    %v304 = vpop.permute.xlu0 %303
    %v306 = vadd.f32 %v300, %v304
    %s307 = sld [smem:[#allocation7]]
    %v308 = vstv %s307
    %v309 = vadd.f32 %v306, %v308
    %vm310 = vcmp.ge.f32.partialorder %v309, 0.0
    %v311 = vmul.f32 %v309, 0.01
    %v312 = vsel %vm310, %v309, %v311
    %vm313 = vcmp.gt.f32.partialorder %v296, 0.0
    %v314 = vsel %vm313, %v312, -1e+30
    %vm315 = vcmask 64512
    %v316 = vsel %vm315, %v314, -inf
    %317 = vmax.xlane.f32.xlu0 %v316
    %v318 = vpop.xlane.xlu0 %317
    %v319 = vsub.f32 %v314, %v318
    %v320 = vmul.f32 %v319, 1.442695
    %v321 = vpow.pop %v320
    %v322 = vmul.f32 %v321, %v296
    %v323 = vsel %vm315, %v322, 0.0
    %324 = vadd.xlane.f32.xlu0 %v323
    %v325 = vpop.xlane.xlu0 %324
    %v326 = vmax.f32 %v325, 1e-30
    %v327 = vrcp.pop %v326
    %v328 = vmul.f32 %v322, %v327
    %v330 = vsel %vm315, %v328, 0
    %332 = vmatprep.subr.mxu0 0.0
    %333 = vmatpush1.msra.mxu0 %v144
    %334 = vmatprep.subr.mxu0 0.0
    %335 = vmatpush1.msra.mxu0 0.0
    %336 = vmatprep.subr.mxu0 0.0
    %337 = vmatpush1.msra.mxu0 0.0
    %338 = vmatprep.subr.mxu0 0.0
    %339 = vmatpush1.msra.mxu0 0.0
    %340 = vmatprep.subr.mxu0 0.0
    %341 = vmatpush1.msra.mxu0 0.0
    %342 = vmatprep.subr.mxu0 0.0
    %343 = vmatpush1.msra.mxu0 0.0
    %344 = vmatprep.subr.mxu0 0.0
    %345 = vmatpush1.msra.mxu0 0.0
    %346 = vmatprep.subr.mxu0 0.0
    %347 = vmatpush1.msra.mxu0 0.0
    %348 = vmatprep.subr.mxu0 0.0
    %349 = vmatpush1.msra.mxu0 0.0
    %350 = vmatprep.subr.mxu0 0.0
    %351 = vmatpush1.msra.mxu0 0.0
    %352 = vmatprep.subr.mxu0 0.0
    %353 = vmatpush1.msra.mxu0 0.0
    %354 = vmatprep.subr.mxu0 0.0
    %355 = vmatpush1.msra.mxu0 0.0
    %356 = vmatprep.subr.mxu0 0.0
    %357 = vmatpush1.msra.mxu0 0.0
    %358 = vmatprep.subr.mxu0 0.0
    %359 = vmatpush1.msra.mxu0 0.0
    %360 = vmatprep.subr.mxu0 0.0
    %361 = vmatpush1.msra.mxu0 0.0
    %362 = vmatprep.subr.mxu0 0.0
    %363 = vmatpush1.msra.mxu0 0.0
    %364 = vmatprep.subr.mxu0 0.0
    %365 = vmatpush1.msra.mxu0 0.0
    %366 = vmatprep.subr.mxu0 0.0
    %367 = vmatpush1.msra.mxu0 0.0
    %368 = vmatprep.subr.mxu0 0.0
    %369 = vmatpush1.msra.mxu0 0.0
    %370 = vmatprep.subr.mxu0 0.0
    %371 = vmatpush1.msra.mxu0 0.0
    %372 = vmatprep.subr.mxu0 0.0
    %373 = vmatpush1.msra.mxu0 0.0
    %374 = vmatprep.subr.mxu0 0.0
    %375 = vmatpush1.msra.mxu0 0.0
    %376 = vmatprep.subr.mxu0 0.0
    %377 = vmatpush1.msra.mxu0 0.0
    %378 = vmatprep.subr.mxu0 0.0
    %379 = vmatpush1.msra.mxu0 0.0
    %380 = vmatprep.subr.mxu0 0.0
    %381 = vmatpush1.msra.mxu0 0.0
    %382 = vmatprep.subr.mxu0 0.0
    %383 = vmatpush1.msra.mxu0 0.0
    %384 = vmatprep.subr.mxu0 0.0
    %385 = vmatpush1.msra.mxu0 0.0
    %386 = vmatprep.subr.mxu0 0.0
    %387 = vmatpush1.msra.mxu0 0.0
    %388 = vmatprep.subr.mxu0 0.0
    %389 = vmatpush1.msra.mxu0 0.0
    %390 = vmatprep.subr.mxu0 0.0
    %391 = vmatpush1.msra.mxu0 0.0
    %392 = vmatprep.subr.mxu0 0.0
    %393 = vmatpush1.msra.mxu0 0.0
    %394 = vmatprep.subr.mxu0 0.0
    %395 = vmatpush1.msra.mxu0 0.0
    %396 = vmatprep.mubr.f32.mxu0 0.0
    %397 = vmatmul.mubr.f32.gmra.mrb[0].mxu0 %v330
    %v398 = vpop.f32.mrb[0].mxu0
    %v399 = vadd.f32 0.0, %v398
    %v400 = vpop.f32.mrb[0].mxu0
    %401 = vdwg.mxu0
    %402 = vst.msk [vmem:[%s7] sm:$0xff] %vm315, %v399
    %v403 = vlaneseq
    %v404 = vshrl.u32 %v403, 7
    %v405 = vsub.s32 1, %v404
    %v406 = vrot.slane %v221, %v405
    %407 = vset.pattern.permute.xlu0 1
    %408 = vperm.xlu0 %407, %v293
    %v409 = vpop.permute.xlu0 %408
    %v411 = vadd.f32 %v406, %v409
    %s412 = sld [smem:[#allocation7 + $0x1]]
    %v413 = vstv %s412
    %v414 = vadd.f32 %v411, %v413
    %vm415 = vcmp.ge.f32.partialorder %v414, 0.0
    %v416 = vmul.f32 %v414, 0.01
    %v417 = vsel %vm415, %v414, %v416
    %v418 = vsel %vm313, %v417, -1e+30
    %v419 = vsel %vm315, %v418, -inf
    %420 = vmax.xlane.f32.xlu0 %v419
    %v421 = vpop.xlane.xlu0 %420
    %v422 = vsub.f32 %v418, %v421
    %v423 = vmul.f32 %v422, 1.442695
    %v424 = vpow.pop %v423
    %v425 = vmul.f32 %v424, %v296
    %v426 = vsel %vm315, %v425, 0.0
    %427 = vadd.xlane.f32.xlu0 %v426
    %v428 = vpop.xlane.xlu0 %427
    %v429 = vmax.f32 %v428, 1e-30
    %v430 = vrcp.pop %v429
    %v431 = vmul.f32 %v425, %v430
    %432 = vrot.lane.b32.xlu0 %v144, 120
    %v433 = vpop.permute.xlu0 %432
    %v436 = vsel %vm315, %v431, 0
    %438 = vmatprep.subr.mxu0 0.0
    %439 = vmatpush1.msra.mxu0 %v433
    %440 = vmatprep.subr.mxu0 0.0
    %441 = vmatpush1.msra.mxu0 0.0
    %442 = vmatprep.subr.mxu0 0.0
    %443 = vmatpush1.msra.mxu0 0.0
    %444 = vmatprep.subr.mxu0 0.0
    %445 = vmatpush1.msra.mxu0 0.0
    %446 = vmatprep.subr.mxu0 0.0
    %447 = vmatpush1.msra.mxu0 0.0
    %448 = vmatprep.subr.mxu0 0.0
    %449 = vmatpush1.msra.mxu0 0.0
    %450 = vmatprep.subr.mxu0 0.0
    %451 = vmatpush1.msra.mxu0 0.0
    %452 = vmatprep.subr.mxu0 0.0
    %453 = vmatpush1.msra.mxu0 0.0
    %454 = vmatprep.subr.mxu0 0.0
    %455 = vmatpush1.msra.mxu0 0.0
    %456 = vmatprep.subr.mxu0 0.0
    %457 = vmatpush1.msra.mxu0 0.0
    %458 = vmatprep.subr.mxu0 0.0
    %459 = vmatpush1.msra.mxu0 0.0
    %460 = vmatprep.subr.mxu0 0.0
    %461 = vmatpush1.msra.mxu0 0.0
    %462 = vmatprep.subr.mxu0 0.0
    %463 = vmatpush1.msra.mxu0 0.0
    %464 = vmatprep.subr.mxu0 0.0
    %465 = vmatpush1.msra.mxu0 0.0
    %466 = vmatprep.subr.mxu0 0.0
    %467 = vmatpush1.msra.mxu0 0.0
    %468 = vmatprep.subr.mxu0 0.0
    %469 = vmatpush1.msra.mxu0 0.0
    %470 = vmatprep.subr.mxu0 0.0
    %471 = vmatpush1.msra.mxu0 0.0
    %472 = vmatprep.subr.mxu0 0.0
    %473 = vmatpush1.msra.mxu0 0.0
    %474 = vmatprep.subr.mxu0 0.0
    %475 = vmatpush1.msra.mxu0 0.0
    %476 = vmatprep.subr.mxu0 0.0
    %477 = vmatpush1.msra.mxu0 0.0
    %478 = vmatprep.subr.mxu0 0.0
    %479 = vmatpush1.msra.mxu0 0.0
    %480 = vmatprep.subr.mxu0 0.0
    %481 = vmatpush1.msra.mxu0 0.0
    %482 = vmatprep.subr.mxu0 0.0
    %483 = vmatpush1.msra.mxu0 0.0
    %484 = vmatprep.subr.mxu0 0.0
    %485 = vmatpush1.msra.mxu0 0.0
    %486 = vmatprep.subr.mxu0 0.0
    %487 = vmatpush1.msra.mxu0 0.0
    %488 = vmatprep.subr.mxu0 0.0
    %489 = vmatpush1.msra.mxu0 0.0
    %490 = vmatprep.subr.mxu0 0.0
    %491 = vmatpush1.msra.mxu0 0.0
    %492 = vmatprep.subr.mxu0 0.0
    %493 = vmatpush1.msra.mxu0 0.0
    %494 = vmatprep.subr.mxu0 0.0
    %495 = vmatpush1.msra.mxu0 0.0
    %496 = vmatprep.subr.mxu0 0.0
    %497 = vmatpush1.msra.mxu0 0.0
    %498 = vmatprep.subr.mxu0 0.0
    %499 = vmatpush1.msra.mxu0 0.0
    %500 = vmatprep.subr.mxu0 0.0
    %501 = vmatpush1.msra.mxu0 0.0
    %502 = vmatprep.mubr.f32.mxu0 0.0
    %503 = vmatmul.mubr.f32.gmra.mrb[0].mxu0 %v436
    %v504 = vpop.f32.mrb[0].mxu0
    %v505 = vadd.f32 0.0, %v504
    %v506 = vpop.f32.mrb[0].mxu0
    %507 = vdwg.mxu0
    %509 = vrot.lane.b32.xlu0 %v505, 8
    %v510 = vpop.permute.xlu0 %509
    %vm512 = vcmask 130112
    %513 = vst.msk [vmem:[%s7] sm:$0xff] %vm512, %v510
    // Predicated region
    $region42: #{_lambda_.3} parent=1 // pred_check
      _
    $region43: #{_lambda_.3} parent=1 // pred_check_branch
      %515 = sbr.rel (0) target = $region45
    $region44: #{_lambda_.3} parent=1 // pred_region
      _
    $region45: #{_lambda_.3} parent=1 // pred_fallthru
      _
    // Predicated region
    $region46: #{_lambda_.3} parent=1 // pred_check
      _
    $region47: #{_lambda_.3} parent=1 // pred_check_branch
      %517 = sbr.rel (0) target = $region49
    $region48: #{_lambda_.3} parent=1 // pred_region
      _
    $region49: #{_lambda_.3} parent=1 // pred_fallthru
      _
    %518 = vsyncpa [#allocation3], 1
    %519 = vsyncpa [#allocation6], 1
    %520 = vsyncpa [#allocation4], 1

</llo_original>
